<compile_context>
chip_gen: v5e
topology: v5e:2x2
jax: 0.10.0
libtpu: 0.0.40
codegen_flags: <defaults>
</compile_context>

<pallas_src>
import functools

import numpy as np
import jax
import jax.numpy as jnp
from jax import lax
from jax.experimental import pallas as pl
from jax.experimental.pallas import tpu as pltpu

SED_C = 13                 # SED classes
DOA_C = 39                 # DOA channels (= 3 * SED_C)
TOTAL_C = 52               # channels consumed by the loss
GROUP = 32                 # original rows packed per dense row
W = GROUP * TOTAL_C        # 1664 = 13 * 128 lanes (fully lane-dense)


def _sed_doa_loss_kernel(pred_ref, tgt_ref, aux_ref, part_ref, *, valid_last_rows):
    """One tile of `tg` dense group-rows (each = 32 original rows x 52 channels)."""
    x = pred_ref[...].astype(jnp.float32)          # (tg, 1664) predictions
    y = tgt_ref[...].astype(jnp.float32)           # (tg, 1664) labels
    tg = x.shape[0]

    scale = aux_ref[0:1, :]                        # -w0/(M*13) | +w1/(M*39) per lane
    is_sed = aux_ref[1:2, :] != 0.0                # channel-in-52 < 13
    is_c1 = aux_ref[2:3, :] != 0.0                 # DOA chunk 0 lanes (13..25)
    is_c2 = aux_ref[3:4, :] != 0.0                 # DOA chunk 1 lanes (26..38)

    # ---- SED: BCE with PyTorch's log clamp at -100 (sign folded into scale) ----
    log_x = jnp.maximum(jnp.log(x), -100.0)            # EUP
    log_1mx = jnp.maximum(jnp.log(1.0 - x), -100.0)    # EUP
    bce = log_1mx + y * (log_x - log_1mx)              # = y*log(x) + (1-y)*log(1-x)

    # ---- DOA: sed_label.repeat(1,1,3) via lane rolls (XLU), then squared error ----
    rep = jnp.where(is_c1, pltpu.roll(y, SED_C, 1),
                    jnp.where(is_c2, pltpu.roll(y, 2 * SED_C, 1),
                              pltpu.roll(y, 3 * SED_C, 1)))
    d = x * rep - y

    # Weighted, mean-normalised per-element contribution (NaNs from log of DOA lanes
    # are removed by the select — jnp.where never propagates the unselected branch).
    contrib = jnp.where(is_sed, bce, d * d) * scale     # (tg, 1664)

    # ---- per-tile partial sums on the otherwise-idle MXU -----------------------
    # LHS row 0 is all-ones, rows 1..7 are zero -> result row 0 holds the column sums,
    # rows 1..7 are exact zeros (keeps the output block sublane-aligned & lane-dense).
    lhs = (lax.broadcasted_iota(jnp.int32, (8, tg), 0) == 0).astype(jnp.float32)

    def reduce_rows(a):
        part_ref[...] = jnp.dot(lhs, a, preferred_element_type=jnp.float32,
                                precision=lax.Precision.HIGHEST)

    if valid_last_rows == 0:
        # Every tile is full: no masking code emitted at all.
        reduce_rows(contrib)
    else:
        last = pl.num_programs(0) - 1

        @pl.when(pl.program_id(0) < last)
        def _():
            reduce_rows(contrib)

        @pl.when(pl.program_id(0) == last)   # only the ragged last tile pays for a mask
        def _():
            r = lax.broadcasted_iota(jnp.int32, (tg, 1), 0)
            reduce_rows(jnp.where(r < valid_last_rows, contrib, 0.0))


def sed_doa_loss(output, target, loss_weight=(1.0, 10.0), tile_rows=4096):
    """output: [B, T, 52]; target: [B, T, C>=52]. Returns scalar f32 loss."""
    B, T, C = output.shape
    assert C == TOTAL_C, "output must have 13 SED + 39 DOA channels"
    assert target.shape[0] == B and target.shape[1] == T and target.shape[2] >= TOTAL_C
    if target.shape[2] != TOTAL_C:
        # TODO(synk): this slice is an extra HBM pass; prefer pre-sliced 52-channel targets.
        target = target[..., :TOTAL_C]

    M = B * T
    # Mean normalisation uses the ORIGINAL element counts (PyTorch mean semantics).
    sed_scale = float(loss_weight[0]) / float(M * SED_C)
    doa_scale = float(loss_weight[1]) / float(M * DOA_C)

    pred2 = output.reshape(M, TOTAL_C)
    tgt2 = target.reshape(M, TOTAL_C)

    # Zero-pad rows to a multiple of GROUP; zero rows contribute exactly 0 to both the
    # BCE sum (x=0,y=0 with the -100 clamp) and the MSE sum (0*0-0)^2.
    M_pad = ((M + GROUP - 1) // GROUP) * GROUP
    if M_pad != M:
        pred2 = jnp.pad(pred2, ((0, M_pad - M), (0, 0)))
        tgt2 = jnp.pad(tgt2, ((0, M_pad - M), (0, 0)))
    Mg = M_pad // GROUP
    pred_d = pred2.reshape(Mg, W)        # free reshape: rows are contiguous
    tgt_d = tgt2.reshape(Mg, W)

    # Tile size in dense group-rows; split into >= 2 tiles whenever possible (v7x 2 TCs).
    tg_default = max(8, (tile_rows // GROUP // 8) * 8)
    if Mg <= 8:
        tg = Mg                                      # single full-extent block
    else:
        half8 = (((Mg + 1) // 2 + 7) // 8) * 8
        tg = max(8, min(tg_default, half8))
    n_tiles = (Mg + tg - 1) // tg
    valid_last_rows = Mg % tg                        # 0 => every tile is full

    # Static per-lane constants: scale row, SED-lane mask, DOA chunk-0/1 masks.
    c = np.arange(W) % TOTAL_C
    aux = np.zeros((8, W), np.float32)
    aux[0] = np.where(c < SED_C, -sed_scale, doa_scale)   # BCE leading minus folded in
    aux[1] = c < SED_C
    aux[2] = (c >= SED_C) & (c < 2 * SED_C)
    aux[3] = (c >= 2 * SED_C) & (c < 3 * SED_C)
    aux = jnp.asarray(aux)

    kernel = functools.partial(_sed_doa_loss_kernel, valid_last_rows=valid_last_rows)

    itemsize = jnp.dtype(output.dtype).itemsize
    cost = pl.CostEstimate(
        flops=22 * M_pad * TOTAL_C + 2 * 8 * M_pad * TOTAL_C,
        transcendentals=2 * M_pad * TOTAL_C,
        bytes_accessed=2 * M_pad * TOTAL_C * itemsize + (n_tiles * 8 + 8) * W * 4)

    partials = pl.pallas_call(
        kernel,
        out_shape=jax.ShapeDtypeStruct((n_tiles * 8, W), jnp.float32),
        grid=(n_tiles,),
        in_specs=[pl.BlockSpec((tg, W), lambda i: (i, 0)),
                  pl.BlockSpec((tg, W), lambda i: (i, 0)),
                  pl.BlockSpec((8, W), lambda i: (0, 0))],
        out_specs=pl.BlockSpec((8, W), lambda i: (i, 0)),
        compiler_params=pltpu.CompilerParams(
            dimension_semantics=("parallel",),
            vmem_limit_bytes=32 * 1024 * 1024),
        cost_estimate=cost,
    )(pred_d, tgt_d, aux)

    # Tiny cross-tile reduction (rows 1..7 of each block are exact zeros).
    return jnp.sum(partials)


def _reference(output, target, loss_weight=(1.0, 10.0)):
    sed_out = output[:, :, :SED_C]
    doa_out = output[:, :, SED_C:]
    sed_label = target[:, :, :SED_C]
    doa_label = target[:, :, SED_C:TOTAL_C]
    log_x = jnp.maximum(jnp.log(sed_out), -100.0)
    log_1mx = jnp.maximum(jnp.log(1.0 - sed_out), -100.0)
    loss_sed = jnp.mean(-(sed_label * log_x + (1.0 - sed_label) * log_1mx))
    sed_rep = jnp.tile(sed_label, (1, 1, 3))
    loss_doa = jnp.mean((doa_out * sed_rep - doa_label) ** 2)
    return loss_weight[0] * loss_sed + loss_weight[1] * loss_doa


def _make_case(key, B, T):
    k1, k2, k3, k4 = jax.random.split(key, 4)
    sed_out = jax.nn.sigmoid(jax.random.normal(k1, (B, T, SED_C), jnp.float32))
    doa_out = 0.5 * jax.random.normal(k2, (B, T, DOA_C), jnp.float32)
    output = jnp.concatenate([sed_out, doa_out], axis=-1)
    sed_label = (jax.random.uniform(k3, (B, T, SED_C)) > 0.5).astype(jnp.float32)
    doa_label = 0.5 * jax.random.normal(k4, (B, T, DOA_C), jnp.float32)
    target = jnp.concatenate([sed_label, doa_label], axis=-1)
    return output, target


if __name__ == "__main__":
    key = jax.random.PRNGKey(0)
    ka, kb = jax.random.split(key)

    # Case 1: tiny single-tile path (M=100 -> padded to 128 rows -> one (4,1664) block).
    out1, tgt1 = _make_case(ka, 2, 50)
    loss1 = jax.block_until_ready(sed_doa_loss(out1, tgt1))
    ref1 = jax.block_until_ready(_reference(out1, tgt1))
    # Tolerance leaves margin for the MXU f32 reduction path; real formula bugs are >>1%.
    assert jnp.allclose(loss1, ref1, rtol=5e-3, atol=1e-6), (loss1, ref1)

    # Case 2: multi-tile path with row padding and a ragged (masked) last tile
    # (M=300 -> 320 rows -> 10 group-rows -> two tiles of 8; last tile has 2 valid rows).
    out2, tgt2 = _make_case(kb, 2, 150)
    loss2 = jax.block_until_ready(sed_doa_loss(out2, tgt2))
    ref2 = jax.block_until_ready(_reference(out2, tgt2))
    assert jnp.allclose(loss2, ref2, rtol=5e-3, atol=1e-6), (loss2, ref2)

    print("KERNEL_OK")
</pallas_src>

<mosaic_0001>
module attributes {stable_mosaic.version = 11 : i64} {
  func.func @_sed_doa_loss_kernel(%arg0: i32, %arg1: memref<4x1664xf32, #tpu.memory_space<vmem>>, %arg2: memref<4x1664xf32, #tpu.memory_space<vmem>>, %arg3: memref<8x1664xf32, #tpu.memory_space<vmem>>, %arg4: memref<8x1664xf32, #tpu.memory_space<vmem>>) attributes {dimension_semantics = [#tpu.dimension_semantics<parallel>], iteration_bounds = array<i64: 1>, scalar_prefetch = 0 : i64, scratch_operands = 0 : i64, tpu.core_type = #tpu.core_type<tc>, window_params = [{transform_indices = @transform_0, window_bounds = array<i64: 4, 1664>}, {transform_indices = @transform_1, window_bounds = array<i64: 4, 1664>}, {pipeline_mode = #tpu.pipeline_mode<synchronous>, transform_indices = @transform_2, window_bounds = array<i64: 8, 1664>}, {transform_indices = @transform_3, window_bounds = array<i64: 8, 1664>}]} {
    %c0 = arith.constant 0 : index
    %c0_0 = arith.constant 0 : index
    %0 = vector.load %arg1[%c0, %c0_0] : memref<4x1664xf32, #tpu.memory_space<vmem>>, vector<4x1664xf32>
    %c0_1 = arith.constant 0 : index
    %c0_2 = arith.constant 0 : index
    %1 = vector.load %arg2[%c0_1, %c0_2] : memref<4x1664xf32, #tpu.memory_space<vmem>>, vector<4x1664xf32>
    %c0_3 = arith.constant 0 : index
    %c0_4 = arith.constant 0 : index
    %2 = vector.load %arg3[%c0_3, %c0_4] : memref<8x1664xf32, #tpu.memory_space<vmem>>, vector<1x1664xf32>
    %c1 = arith.constant 1 : index
    %c0_5 = arith.constant 0 : index
    %3 = vector.load %arg3[%c1, %c0_5] : memref<8x1664xf32, #tpu.memory_space<vmem>>, vector<1x1664xf32>
    %cst = arith.constant 0.000000e+00 : f32
    %4 = vector.broadcast %cst : f32 to vector<1x1664xf32>
    %5 = arith.cmpf one, %3, %4 : vector<1x1664xf32>
    %c2 = arith.constant 2 : index
    %c0_6 = arith.constant 0 : index
    %6 = vector.load %arg3[%c2, %c0_6] : memref<8x1664xf32, #tpu.memory_space<vmem>>, vector<1x1664xf32>
    %cst_7 = arith.constant 0.000000e+00 : f32
    %7 = vector.broadcast %cst_7 : f32 to vector<1x1664xf32>
    %8 = arith.cmpf one, %6, %7 : vector<1x1664xf32>
    %c3 = arith.constant 3 : index
    %c0_8 = arith.constant 0 : index
    %9 = vector.load %arg3[%c3, %c0_8] : memref<8x1664xf32, #tpu.memory_space<vmem>>, vector<1x1664xf32>
    %cst_9 = arith.constant 0.000000e+00 : f32
    %10 = vector.broadcast %cst_9 : f32 to vector<1x1664xf32>
    %11 = arith.cmpf one, %9, %10 : vector<1x1664xf32>
    %12 = math.log %0 : vector<4x1664xf32>
    %cst_10 = arith.constant -1.000000e+02 : f32
    %13 = vector.broadcast %cst_10 : f32 to vector<4x1664xf32>
    %14 = arith.maximumf %12, %13 : vector<4x1664xf32>
    %cst_11 = arith.constant 1.000000e+00 : f32
    %15 = vector.broadcast %cst_11 : f32 to vector<4x1664xf32>
    %16 = arith.subf %15, %0 : vector<4x1664xf32>
    %17 = math.log %16 : vector<4x1664xf32>
    %cst_12 = arith.constant -1.000000e+02 : f32
    %18 = vector.broadcast %cst_12 : f32 to vector<4x1664xf32>
    %19 = arith.maximumf %17, %18 : vector<4x1664xf32>
    %20 = arith.subf %14, %19 : vector<4x1664xf32>
    %21 = arith.mulf %1, %20 : vector<4x1664xf32>
    %22 = arith.addf %19, %21 : vector<4x1664xf32>
    %c13_i32 = arith.constant 13 : i32
    %23 = tpu.dynamic_rotate %1 by %c13_i32 dim 1 : vector<4x1664xf32>, i32 -> vector<4x1664xf32>
    %c26_i32 = arith.constant 26 : i32
    %24 = tpu.dynamic_rotate %1 by %c26_i32 dim 1 : vector<4x1664xf32>, i32 -> vector<4x1664xf32>
    %c39_i32 = arith.constant 39 : i32
    %25 = tpu.dynamic_rotate %1 by %c39_i32 dim 1 : vector<4x1664xf32>, i32 -> vector<4x1664xf32>
    %26 = vector.shape_cast %11 : vector<1x1664xi1> to vector<1x1664xi1>
    %27 = vector.broadcast %26 : vector<1x1664xi1> to vector<4x1664xi1>
    %28 = arith.select %27, %24, %25 : vector<4x1664xi1>, vector<4x1664xf32>
    %29 = vector.shape_cast %8 : vector<1x1664xi1> to vector<1x1664xi1>
    %30 = vector.broadcast %29 : vector<1x1664xi1> to vector<4x1664xi1>
    %31 = arith.select %30, %23, %28 : vector<4x1664xi1>, vector<4x1664xf32>
    %32 = arith.mulf %0, %31 : vector<4x1664xf32>
    %33 = arith.subf %32, %1 : vector<4x1664xf32>
    %34 = arith.mulf %33, %33 : vector<4x1664xf32>
    %35 = vector.shape_cast %5 : vector<1x1664xi1> to vector<1x1664xi1>
    %36 = vector.broadcast %35 : vector<1x1664xi1> to vector<4x1664xi1>
    %37 = arith.select %36, %22, %34 : vector<4x1664xi1>, vector<4x1664xf32>
    %38 = vector.broadcast %2 : vector<1x1664xf32> to vector<4x1664xf32>
    %39 = arith.mulf %37, %38 : vector<4x1664xf32>
    %40 = tpu.iota {dimensions = array<i32: 0>} : vector<8x4xi32>
    %c0_i32 = arith.constant 0 : i32
    %41 = vector.broadcast %c0_i32 : i32 to vector<8x4xi32>
    %42 = arith.cmpi eq, %40, %41 : vector<8x4xi32>
    %43 = arith.extui %42 : vector<8x4xi1> to vector<8x4xi32>
    %44 = arith.sitofp %43 : vector<8x4xi32> to vector<8x4xf32>
    %cst_13 = arith.constant dense<0.000000e+00> : vector<8x1664xf32>
    %45 = tpu.matmul %44, %39, %cst_13 {dimension_numbers = #tpu.dot_dimension_numbers<[1], [0], [0], [1], [0, 0, 1, 1], [], []>, precision = #tpu.contract_precision<fp32>} : vector<8x4xf32>, vector<4x1664xf32>, vector<8x1664xf32> -> vector<8x1664xf32>
    %c0_14 = arith.constant 0 : index
    %c0_15 = arith.constant 0 : index
    %46 = vector.load %arg4[%c0_14, %c0_15] : memref<8x1664xf32, #tpu.memory_space<vmem>>, vector<8x1664xf32>
    tpu.vector_store %arg4[%c0_14, %c0_15], %45 {strides = array<i32>} : memref<8x1664xf32, #tpu.memory_space<vmem>>, vector<8x1664xf32>,
    return
  }
  func.func @transform_0(%arg0: i32) -> (i32, i32) {
    %c0_i32 = arith.constant 0 : i32
    %c0_i32_0 = arith.constant 0 : i32
    return %arg0, %c0_i32 : i32, i32
  }
  func.func @transform_1(%arg0: i32) -> (i32, i32) {
    %c0_i32 = arith.constant 0 : i32
    %c0_i32_0 = arith.constant 0 : i32
    return %arg0, %c0_i32 : i32, i32
  }
  func.func @transform_2(%arg0: i32) -> (i32, i32) {
    %c0_i32 = arith.constant 0 : i32
    %c0_i32_0 = arith.constant 0 : i32
    %c0_i32_1 = arith.constant 0 : i32
    return %c0_i32, %c0_i32_0 : i32, i32
  }
  func.func @transform_3(%arg0: i32) -> (i32, i32) {
    %c0_i32 = arith.constant 0 : i32
    %c0_i32_0 = arith.constant 0 : i32
    return %arg0, %c0_i32 : i32, i32
  }
}

</mosaic_0001>

<llo_original>
// kernel: tpu_custom_call.1
$region0: #{tpu_custom_call.1}
  #allocation0 [shape = 'u32[]', space=smem, size = 0x4, offset = 0x4, fixed_abs, tag = 'smem constant byte address 0x4 - core index']
  #allocation1 [shape = 'u32[72,128]{1,0:T(1,128)}', space=vmem, size = 0x9000, scoped, tag = 'internal scratch']
  %s0 = inlined_call_operand.hbm [shape: f32[4,1664], index: 0, kind: input, shape index: {}]
  %s1 = inlined_call_operand.hbm [shape: f32[4,1664], index: 1, kind: input, shape index: {}]
  %s2 = inlined_call_operand.hbm [shape: f32[8,1664], index: 2, kind: input, shape index: {}]
  %s3 = inlined_call_operand.hbm [shape: f32[8,1664], index: 3, kind: output, shape index: {}]
  %s4 = sld [smem:[#allocation0]]
  $region34: #{tpu_custom_call.1} parent=0
    _
  %s6 = ssub.s32 1, %s4
  %s7 = scalar_select 0, %s6, %s4
  $region1: #{tpu_custom_call.1} parent=0
    #allocation2 [shape = 'u8[26624]{0}', space=vmem, size = 0x6800, scoped, tag = 'input window, operand 0, single buffered']
    #allocation3 [shape = 's32[1]{0}', space=sflag, size = 0x4, scoped, tag = 'scoped memory for tpu_custom_call.1']
    #allocation4 [shape = 's32[1]{0}', space=sflag, size = 0x4, scoped, tag = 'scoped memory for tpu_custom_call.1']
    #allocation5 [shape = 'u8[26624]{0}', space=vmem, size = 0x6800, scoped, tag = 'input window, operand 1, single buffered']
    #allocation6 [shape = 's32[1]{0}', space=sflag, size = 0x4, scoped, tag = 'scoped memory for tpu_custom_call.1']
    #allocation7 [shape = 'u8[53248]{0}', space=vmem, size = 0xd000, scoped, tag = 'input window, operand 2, single buffered']
    #allocation8 [shape = 'u8[53248]{0}', space=vmem, size = 0xd000, scoped, tag = 'output window, operand 0, single buffered']
    %8 = vsyncpa [#allocation3], 0
    %9 = vsyncpa [#allocation6], 0
    %10 = vsyncpa [#allocation4], 0
    // Predicated region
    $region2: #{tpu_custom_call.1} parent=1 // pred_check
      _
    $region3: #{tpu_custom_call.1} parent=1 // pred_check_branch
      %12 = sbr.rel (0) target = $region5
    $region4: #{tpu_custom_call.1} parent=1 // pred_region
      %14 = vsyncadd [#allocation3], 0
      %s16 = sshll.u32 %s0, 4
      %s17 = int_to_ptr.hbm [resolvable:$true] %s16
      %s18 = sshll.u32 [#allocation2], 4
      %s19 = int_to_ptr.vmem [resolvable:$true] %s18
      %21 = dma.hbm_to_vmem [thread:$0]  %s17, 832, %s19, [#allocation3]
    $region5: #{tpu_custom_call.1} parent=1 // pred_fallthru
      _
    // Predicated region
    $region6: #{tpu_custom_call.1} parent=1 // pred_check
      _
    $region7: #{tpu_custom_call.1} parent=1 // pred_check_branch
      %23 = sbr.rel (0) target = $region9
    $region8: #{tpu_custom_call.1} parent=1 // pred_region
      %25 = vsyncadd [#allocation6], 0
      %s27 = sshll.u32 %s1, 4
      %s28 = int_to_ptr.hbm [resolvable:$true] %s27
      %s29 = sshll.u32 [#allocation5], 4
      %s30 = int_to_ptr.vmem [resolvable:$true] %s29
      %32 = dma.hbm_to_vmem [thread:$0]  %s28, 832, %s30, [#allocation6]
    $region9: #{tpu_custom_call.1} parent=1 // pred_fallthru
      _
    // Predicated region
    $region10: #{tpu_custom_call.1} parent=1 // pred_check
      _
    $region11: #{tpu_custom_call.1} parent=1 // pred_check_branch
      %34 = sbr.rel (0) target = $region13
    $region12: #{tpu_custom_call.1} parent=1 // pred_region
      %36 = vsyncadd [#allocation6], 0
      %s38 = sshll.u32 %s2, 4
      %s39 = int_to_ptr.hbm [resolvable:$true] %s38
      %s40 = sshll.u32 [#allocation7], 4
      %s41 = int_to_ptr.vmem [resolvable:$true] %s40
      %43 = dma.hbm_to_vmem [thread:$0]  %s39, 1664, %s41, [#allocation6]
    $region13: #{tpu_custom_call.1} parent=1 // pred_fallthru
      _
    // Predicated region
    $region14: #{tpu_custom_call.1} parent=1 // pred_check
      _
    $region15: #{tpu_custom_call.1} parent=1 // pred_check_branch
      %45 = sbr.rel (0) target = $region17
    $region16: #{tpu_custom_call.1} parent=1 // pred_region
      %47 = dma.done [#allocation3], 832
    $region17: #{tpu_custom_call.1} parent=1 // pred_fallthru
      _
    // Predicated region
    $region18: #{tpu_custom_call.1} parent=1 // pred_check
      _
    $region19: #{tpu_custom_call.1} parent=1 // pred_check_branch
      %49 = sbr.rel (0) target = $region21
    $region20: #{tpu_custom_call.1} parent=1 // pred_region
      %51 = dma.done [#allocation6], 832
    $region21: #{tpu_custom_call.1} parent=1 // pred_fallthru
      _
    // Predicated region
    $region22: #{tpu_custom_call.1} parent=1 // pred_check
      _
    $region23: #{tpu_custom_call.1} parent=1 // pred_check_branch
      %53 = sbr.rel (0) target = $region25
    $region24: #{tpu_custom_call.1} parent=1 // pred_region
      %55 = dma.done [#allocation6], 1664
    $region25: #{tpu_custom_call.1} parent=1 // pred_fallthru
      _
    %v56 = vld [vmem:[#allocation2] sm:$0xff]
    %v57 = vld [vmem:[#allocation2 + $0x8] sm:$0xff]
    %v58 = vld [vmem:[#allocation2 + $0x10] sm:$0xff]
    %v59 = vld [vmem:[#allocation2 + $0x18] sm:$0xff]
    %v60 = vld [vmem:[#allocation2 + $0x20] sm:$0xff]
    %v61 = vld [vmem:[#allocation2 + $0x28] sm:$0xff]
    %v62 = vld [vmem:[#allocation2 + $0x30] sm:$0xf]
    %v63 = vld [vmem:[#allocation5] sm:$0xff]
    %v64 = vld [vmem:[#allocation5 + $0x8] sm:$0xff]
    %v65 = vld [vmem:[#allocation5 + $0x10] sm:$0xff]
    %v66 = vld [vmem:[#allocation5 + $0x18] sm:$0xff]
    %v67 = vld [vmem:[#allocation5 + $0x20] sm:$0xff]
    %v68 = vld [vmem:[#allocation5 + $0x28] sm:$0xff]
    %v69 = vld [vmem:[#allocation5 + $0x30] sm:$0xf]
    %v70 = vld [vmem:[#allocation7] ss:$8 sm:$0xf]
    %v71 = vld [vmem:[#allocation7] ss:$8 sm:$0xf0]
    %v72 = vor.u32 %v70, %v71
    %s73 = scalar_lea.vmem [#allocation7], 64
    %v74 = vld [vmem:[%s73] ss:$8 sm:$0xf]
    %v75 = vld [vmem:[%s73] ss:$8 sm:$0x10]
    %v76 = vor.u32 %v74, %v75
    %s77 = scalar_lea.vmem [#allocation7], 1
    %v78 = vld [vmem:[%s77] ss:$8 sm:$0xf]
    %v79 = vld [vmem:[%s77] ss:$8 sm:$0xf0]
    %v80 = vor.u32 %v78, %v79
    %s81 = scalar_lea.vmem [#allocation7], 65
    %v82 = vld [vmem:[%s81] ss:$8 sm:$0xf]
    %v83 = vld [vmem:[%s81] ss:$8 sm:$0x10]
    %v84 = vor.u32 %v82, %v83
    %vm85 = vcmp.ne.f32.partialorder %v80, 0.0
    %vm86 = vcmp.ne.f32.partialorder %v84, 0.0
    %s87 = scalar_lea.vmem [#allocation7], 2
    %v88 = vld [vmem:[%s87] ss:$8 sm:$0xf]
    %v89 = vld [vmem:[%s87] ss:$8 sm:$0xf0]
    %v90 = vor.u32 %v88, %v89
    %s91 = scalar_lea.vmem [#allocation7], 66
    %v92 = vld [vmem:[%s91] ss:$8 sm:$0xf]
    %v93 = vld [vmem:[%s91] ss:$8 sm:$0x10]
    %v94 = vor.u32 %v92, %v93
    %vm95 = vcmp.ne.f32.partialorder %v90, 0.0
    %vm96 = vcmp.ne.f32.partialorder %v94, 0.0
    %s97 = scalar_lea.vmem [#allocation7], 3
    %v98 = vld [vmem:[%s97] ss:$8 sm:$0xf]
    %v99 = vld [vmem:[%s97] ss:$8 sm:$0xf0]
    %v100 = vor.u32 %v98, %v99
    %s101 = scalar_lea.vmem [#allocation7], 67
    %v102 = vld [vmem:[%s101] ss:$8 sm:$0xf]
    %v103 = vld [vmem:[%s101] ss:$8 sm:$0x10]
    %v104 = vor.u32 %v102, %v103
    %vm105 = vcmp.ne.f32.partialorder %v100, 0.0
    %vm106 = vcmp.ne.f32.partialorder %v104, 0.0
    %v107 = vlog2.pop %v56
    %v108 = vmul.f32 %v107, 0.6931472
    %v109 = vlog2.pop %v57
    %v110 = vmul.f32 %v109, 0.6931472
    %v111 = vlog2.pop %v58
    %v112 = vmul.f32 %v111, 0.6931472
    %v113 = vlog2.pop %v59
    %v114 = vmul.f32 %v113, 0.6931472
    %v115 = vlog2.pop %v60
    %v116 = vmul.f32 %v115, 0.6931472
    %v117 = vlog2.pop %v61
    %v118 = vmul.f32 %v117, 0.6931472
    %v119 = vlog2.pop %v62
    %v120 = vmul.f32 %v119, 0.6931472
    %v121 = vmax.f32 %v108, -100.0
    %v122 = vmax.f32 %v110, -100.0
    %v123 = vmax.f32 %v112, -100.0
    %v124 = vmax.f32 %v114, -100.0
    %v125 = vmax.f32 %v116, -100.0
    %v126 = vmax.f32 %v118, -100.0
    %v127 = vmax.f32 %v120, -100.0
    %v128 = vsub.f32 1.0, %v56
    %v129 = vsub.f32 1.0, %v57
    %v130 = vsub.f32 1.0, %v58
    %v131 = vsub.f32 1.0, %v59
    %v132 = vsub.f32 1.0, %v60
    %v133 = vsub.f32 1.0, %v61
    %v134 = vsub.f32 1.0, %v62
    %v135 = vlog2.pop %v128
    %v136 = vmul.f32 %v135, 0.6931472
    %v137 = vlog2.pop %v129
    %v138 = vmul.f32 %v137, 0.6931472
    %v139 = vlog2.pop %v130
    %v140 = vmul.f32 %v139, 0.6931472
    %v141 = vlog2.pop %v131
    %v142 = vmul.f32 %v141, 0.6931472
    %v143 = vlog2.pop %v132
    %v144 = vmul.f32 %v143, 0.6931472
    %v145 = vlog2.pop %v133
    %v146 = vmul.f32 %v145, 0.6931472
    %v147 = vlog2.pop %v134
    %v148 = vmul.f32 %v147, 0.6931472
    %v149 = vmax.f32 %v136, -100.0
    %v150 = vmax.f32 %v138, -100.0
    %v151 = vmax.f32 %v140, -100.0
    %v152 = vmax.f32 %v142, -100.0
    %v153 = vmax.f32 %v144, -100.0
    %v154 = vmax.f32 %v146, -100.0
    %v155 = vmax.f32 %v148, -100.0
    %v156 = vsub.f32 %v121, %v149
    %v157 = vsub.f32 %v122, %v150
    %v158 = vsub.f32 %v123, %v151
    %v159 = vsub.f32 %v124, %v152
    %v160 = vsub.f32 %v125, %v153
    %v161 = vsub.f32 %v126, %v154
    %v162 = vsub.f32 %v127, %v155
    %v163 = vmul.f32 %v63, %v156
    %v164 = vmul.f32 %v64, %v157
    %v165 = vmul.f32 %v65, %v158
    %v166 = vmul.f32 %v66, %v159
    %v167 = vmul.f32 %v67, %v160
    %v168 = vmul.f32 %v68, %v161
    %v169 = vmul.f32 %v69, %v162
    %v170 = vadd.f32 %v149, %v163
    %v171 = vadd.f32 %v150, %v164
    %v172 = vadd.f32 %v151, %v165
    %v173 = vadd.f32 %v152, %v166
    %v174 = vadd.f32 %v153, %v167
    %v175 = vadd.f32 %v154, %v168
    %v176 = vadd.f32 %v155, %v169
    %184 = vst [vmem:[#allocation1] ss:$2 sm:$0xff] %v63
    %s185 = scalar_lea.vmem [#allocation1], 16
    %186 = vst [vmem:[%s185] ss:$2 sm:$0xff] %v64
    %s187 = scalar_lea.vmem [#allocation1], 32
    %188 = vst [vmem:[%s187] ss:$2 sm:$0xff] %v65
    %s189 = scalar_lea.vmem [#allocation1], 48
    %190 = vst [vmem:[%s189] ss:$2 sm:$0xff] %v66
    %v191 = vld.sshfl [vmem:[#allocation1] sm:$0xff pattern:$0x75316420]
    %v192 = vld.sshfl [vmem:[#allocation1 + $0x8] sm:$0xff pattern:$0x75316420]
    %v193 = vld.sshfl [vmem:[#allocation1 + $0x10] sm:$0xff pattern:$0x75316420]
    %v194 = vld.sshfl [vmem:[#allocation1 + $0x18] sm:$0xff pattern:$0x75316420]
    %v195 = vld.sshfl [vmem:[#allocation1 + $0x20] sm:$0xff pattern:$0x75316420]
    %v196 = vld.sshfl [vmem:[#allocation1 + $0x28] sm:$0xff pattern:$0x75316420]
    %v197 = vld.sshfl [vmem:[#allocation1 + $0x30] sm:$0xff pattern:$0x75316420]
    %v198 = vld.sshfl [vmem:[#allocation1 + $0x38] sm:$0xff pattern:$0x75316420]
    %199 = vst [vmem:[#allocation1] ss:$2 sm:$0xff] %v67
    %200 = vst [vmem:[%s185] ss:$2 sm:$0xff] %v68
    %201 = vst [vmem:[%s187] ss:$2 sm:$0xff] %v69
    %v202 = vld.sshfl [vmem:[#allocation1] sm:$0xff pattern:$0x75316420]
    %v203 = vld.sshfl [vmem:[#allocation1 + $0x8] sm:$0xff pattern:$0x75316420]
    %v204 = vld.sshfl [vmem:[#allocation1 + $0x10] sm:$0xff pattern:$0x75316420]
    %v205 = vld.sshfl [vmem:[#allocation1 + $0x18] sm:$0xff pattern:$0x75316420]
    %v206 = vld.sshfl [vmem:[#allocation1 + $0x20] sm:$0xff pattern:$0x75316420]
    %220 = vrot.lane.b32.xlu0 %v191, 13
    %v221 = vpop.permute.xlu0 %220
    %222 = vrot.lane.b32.xlu0 %v192, 13
    %v223 = vpop.permute.xlu0 %222
    %224 = vrot.lane.b32.xlu0 %v193, 13
    %v225 = vpop.permute.xlu0 %224
    %226 = vrot.lane.b32.xlu0 %v194, 13
    %v227 = vpop.permute.xlu0 %226
    %228 = vrot.lane.b32.xlu0 %v195, 13
    %v229 = vpop.permute.xlu0 %228
    %230 = vrot.lane.b32.xlu0 %v196, 13
    %v231 = vpop.permute.xlu0 %230
    %232 = vrot.lane.b32.xlu0 %v197, 13
    %v233 = vpop.permute.xlu0 %232
    %234 = vrot.lane.b32.xlu0 %v198, 13
    %v235 = vpop.permute.xlu0 %234
    %236 = vrot.lane.b32.xlu0 %v202, 13
    %v237 = vpop.permute.xlu0 %236
    %238 = vrot.lane.b32.xlu0 %v203, 13
    %v239 = vpop.permute.xlu0 %238
    %240 = vrot.lane.b32.xlu0 %v204, 13
    %v241 = vpop.permute.xlu0 %240
    %242 = vrot.lane.b32.xlu0 %v205, 13
    %v243 = vpop.permute.xlu0 %242
    %244 = vrot.lane.b32.xlu0 %v206, 13
    %v245 = vpop.permute.xlu0 %244
    %v246 = vlaneseq
    %v247 = vand.u32 %v246, 127
    %vm248 = vcmp.lt.s32.totalorder %v247, 13
    %v249 = vsel %vm248, %v243, %v245
    %v250 = vsel %vm248, %v241, %v243
    %v251 = vsel %vm248, %v239, %v241
    %v252 = vsel %vm248, %v237, %v239
    %v253 = vsel %vm248, %v235, %v237
    %v254 = vsel %vm248, %v233, %v235
    %v255 = vsel %vm248, %v231, %v233
    %v256 = vsel %vm248, %v229, %v231
    %v257 = vsel %vm248, %v227, %v229
    %v258 = vsel %vm248, %v225, %v227
    %v259 = vsel %vm248, %v223, %v225
    %v260 = vsel %vm248, %v221, %v223
    %v261 = vsel %vm248, %v245, %v221
    %262 = vst [vmem:[#allocation1] ss:$2 sm:$0xff] %v63
    %s263 = scalar_lea.vmem [#allocation1], 16
    %264 = vst [vmem:[%s263] ss:$2 sm:$0xff] %v64
    %s265 = scalar_lea.vmem [#allocation1], 32
    %266 = vst [vmem:[%s265] ss:$2 sm:$0xff] %v65
    %s267 = scalar_lea.vmem [#allocation1], 48
    %268 = vst [vmem:[%s267] ss:$2 sm:$0xff] %v66
    %v269 = vld.sshfl [vmem:[#allocation1] sm:$0xff pattern:$0x75316420]
    %v270 = vld.sshfl [vmem:[#allocation1 + $0x8] sm:$0xff pattern:$0x75316420]
    %v271 = vld.sshfl [vmem:[#allocation1 + $0x10] sm:$0xff pattern:$0x75316420]
    %v272 = vld.sshfl [vmem:[#allocation1 + $0x18] sm:$0xff pattern:$0x75316420]
    %v273 = vld.sshfl [vmem:[#allocation1 + $0x20] sm:$0xff pattern:$0x75316420]
    %v274 = vld.sshfl [vmem:[#allocation1 + $0x28] sm:$0xff pattern:$0x75316420]
    %v275 = vld.sshfl [vmem:[#allocation1 + $0x30] sm:$0xff pattern:$0x75316420]
    %v276 = vld.sshfl [vmem:[#allocation1 + $0x38] sm:$0xff pattern:$0x75316420]
    %277 = vst [vmem:[#allocation1] ss:$2 sm:$0xff] %v67
    %278 = vst [vmem:[%s263] ss:$2 sm:$0xff] %v68
    %279 = vst [vmem:[%s265] ss:$2 sm:$0xff] %v69
    %v280 = vld.sshfl [vmem:[#allocation1] sm:$0xff pattern:$0x75316420]
    %v281 = vld.sshfl [vmem:[#allocation1 + $0x8] sm:$0xff pattern:$0x75316420]
    %v282 = vld.sshfl [vmem:[#allocation1 + $0x10] sm:$0xff pattern:$0x75316420]
    %v283 = vld.sshfl [vmem:[#allocation1 + $0x18] sm:$0xff pattern:$0x75316420]
    %v284 = vld.sshfl [vmem:[#allocation1 + $0x20] sm:$0xff pattern:$0x75316420]
    %298 = vrot.lane.b32.xlu0 %v269, 26
    %v299 = vpop.permute.xlu0 %298
    %300 = vrot.lane.b32.xlu0 %v270, 26
    %v301 = vpop.permute.xlu0 %300
    %302 = vrot.lane.b32.xlu0 %v271, 26
    %v303 = vpop.permute.xlu0 %302
    %304 = vrot.lane.b32.xlu0 %v272, 26
    %v305 = vpop.permute.xlu0 %304
    %306 = vrot.lane.b32.xlu0 %v273, 26
    %v307 = vpop.permute.xlu0 %306
    %308 = vrot.lane.b32.xlu0 %v274, 26
    %v309 = vpop.permute.xlu0 %308
    %310 = vrot.lane.b32.xlu0 %v275, 26
    %v311 = vpop.permute.xlu0 %310
    %312 = vrot.lane.b32.xlu0 %v276, 26
    %v313 = vpop.permute.xlu0 %312
    %314 = vrot.lane.b32.xlu0 %v280, 26
    %v315 = vpop.permute.xlu0 %314
    %316 = vrot.lane.b32.xlu0 %v281, 26
    %v317 = vpop.permute.xlu0 %316
    %318 = vrot.lane.b32.xlu0 %v282, 26
    %v319 = vpop.permute.xlu0 %318
    %320 = vrot.lane.b32.xlu0 %v283, 26
    %v321 = vpop.permute.xlu0 %320
    %322 = vrot.lane.b32.xlu0 %v284, 26
    %v323 = vpop.permute.xlu0 %322
    %vm324 = vcmp.lt.s32.totalorder %v247, 26
    %v325 = vsel %vm324, %v321, %v323
    %v326 = vsel %vm324, %v319, %v321
    %v327 = vsel %vm324, %v317, %v319
    %v328 = vsel %vm324, %v315, %v317
    %v329 = vsel %vm324, %v313, %v315
    %v330 = vsel %vm324, %v311, %v313
    %v331 = vsel %vm324, %v309, %v311
    %v332 = vsel %vm324, %v307, %v309
    %v333 = vsel %vm324, %v305, %v307
    %v334 = vsel %vm324, %v303, %v305
    %v335 = vsel %vm324, %v301, %v303
    %v336 = vsel %vm324, %v299, %v301
    %v337 = vsel %vm324, %v323, %v299
    %338 = vst [vmem:[#allocation1] ss:$2 sm:$0xff] %v63
    %s339 = scalar_lea.vmem [#allocation1], 16
    %340 = vst [vmem:[%s339] ss:$2 sm:$0xff] %v64
    %s341 = scalar_lea.vmem [#allocation1], 32
    %342 = vst [vmem:[%s341] ss:$2 sm:$0xff] %v65
    %s343 = scalar_lea.vmem [#allocation1], 48
    %344 = vst [vmem:[%s343] ss:$2 sm:$0xff] %v66
    %v345 = vld.sshfl [vmem:[#allocation1] sm:$0xff pattern:$0x75316420]
    %v346 = vld.sshfl [vmem:[#allocation1 + $0x8] sm:$0xff pattern:$0x75316420]
    %v347 = vld.sshfl [vmem:[#allocation1 + $0x10] sm:$0xff pattern:$0x75316420]
    %v348 = vld.sshfl [vmem:[#allocation1 + $0x18] sm:$0xff pattern:$0x75316420]
    %v349 = vld.sshfl [vmem:[#allocation1 + $0x20] sm:$0xff pattern:$0x75316420]
    %v350 = vld.sshfl [vmem:[#allocation1 + $0x28] sm:$0xff pattern:$0x75316420]
    %v351 = vld.sshfl [vmem:[#allocation1 + $0x30] sm:$0xff pattern:$0x75316420]
    %v352 = vld.sshfl [vmem:[#allocation1 + $0x38] sm:$0xff pattern:$0x75316420]
    %353 = vst [vmem:[#allocation1] ss:$2 sm:$0xff] %v67
    %354 = vst [vmem:[%s339] ss:$2 sm:$0xff] %v68
    %355 = vst [vmem:[%s341] ss:$2 sm:$0xff] %v69
    %v356 = vld.sshfl [vmem:[#allocation1] sm:$0xff pattern:$0x75316420]
    %v357 = vld.sshfl [vmem:[#allocation1 + $0x8] sm:$0xff pattern:$0x75316420]
    %v358 = vld.sshfl [vmem:[#allocation1 + $0x10] sm:$0xff pattern:$0x75316420]
    %v359 = vld.sshfl [vmem:[#allocation1 + $0x18] sm:$0xff pattern:$0x75316420]
    %v360 = vld.sshfl [vmem:[#allocation1 + $0x20] sm:$0xff pattern:$0x75316420]
    %374 = vrot.lane.b32.xlu0 %v345, 39
    %v375 = vpop.permute.xlu0 %374
    %376 = vrot.lane.b32.xlu0 %v346, 39
    %v377 = vpop.permute.xlu0 %376
    %378 = vrot.lane.b32.xlu0 %v347, 39
    %v379 = vpop.permute.xlu0 %378
    %380 = vrot.lane.b32.xlu0 %v348, 39
    %v381 = vpop.permute.xlu0 %380
    %382 = vrot.lane.b32.xlu0 %v349, 39
    %v383 = vpop.permute.xlu0 %382
    %384 = vrot.lane.b32.xlu0 %v350, 39
    %v385 = vpop.permute.xlu0 %384
    %386 = vrot.lane.b32.xlu0 %v351, 39
    %v387 = vpop.permute.xlu0 %386
    %388 = vrot.lane.b32.xlu0 %v352, 39
    %v389 = vpop.permute.xlu0 %388
    %390 = vrot.lane.b32.xlu0 %v356, 39
    %v391 = vpop.permute.xlu0 %390
    %392 = vrot.lane.b32.xlu0 %v357, 39
    %v393 = vpop.permute.xlu0 %392
    %394 = vrot.lane.b32.xlu0 %v358, 39
    %v395 = vpop.permute.xlu0 %394
    %396 = vrot.lane.b32.xlu0 %v359, 39
    %v397 = vpop.permute.xlu0 %396
    %398 = vrot.lane.b32.xlu0 %v360, 39
    %v399 = vpop.permute.xlu0 %398
    %vm400 = vcmp.lt.s32.totalorder %v247, 39
    %v401 = vsel %vm400, %v397, %v399
    %v402 = vsel %vm400, %v395, %v397
    %v403 = vsel %vm400, %v393, %v395
    %v404 = vsel %vm400, %v391, %v393
    %v405 = vsel %vm400, %v389, %v391
    %v406 = vsel %vm400, %v387, %v389
    %v407 = vsel %vm400, %v385, %v387
    %v408 = vsel %vm400, %v383, %v385
    %v409 = vsel %vm400, %v381, %v383
    %v410 = vsel %vm400, %v379, %v381
    %v411 = vsel %vm400, %v377, %v379
    %v412 = vsel %vm400, %v375, %v377
    %v413 = vsel %vm400, %v399, %v375
    %v414 = vsel %vm105, 1, 0
    %v415 = vsel %vm106, 1, 0
    %v416 = vperm.slane %v414, 0
    %v417 = vperm.slane %v414, 1
    %v418 = vperm.slane %v414, 2
    %v419 = vperm.slane %v414, 3
    %v420 = vperm.slane %v414, 4
    %v421 = vperm.slane %v414, 5
    %v422 = vperm.slane %v414, 6
    %v423 = vperm.slane %v414, 7
    %v424 = vperm.slane %v415, 0
    %v425 = vperm.slane %v415, 1
    %v426 = vperm.slane %v415, 2
    %v427 = vperm.slane %v415, 3
    %v428 = vperm.slane %v415, 4
    %vm429 = vcmp.eq.s32.totalorder %v416, 1
    %vm430 = vcmp.eq.s32.totalorder %v417, 1
    %vm431 = vcmp.eq.s32.totalorder %v418, 1
    %vm432 = vcmp.eq.s32.totalorder %v419, 1
    %vm433 = vcmp.eq.s32.totalorder %v420, 1
    %vm434 = vcmp.eq.s32.totalorder %v421, 1
    %vm435 = vcmp.eq.s32.totalorder %v422, 1
    %vm436 = vcmp.eq.s32.totalorder %v423, 1
    %vm437 = vcmp.eq.s32.totalorder %v424, 1
    %vm438 = vcmp.eq.s32.totalorder %v425, 1
    %vm439 = vcmp.eq.s32.totalorder %v426, 1
    %vm440 = vcmp.eq.s32.totalorder %v427, 1
    %vm441 = vcmp.eq.s32.totalorder %v428, 1
    %v442 = vsel %vm429, %v337, %v413
    %v443 = vsel %vm430, %v336, %v412
    %v444 = vsel %vm431, %v335, %v411
    %v445 = vsel %vm432, %v334, %v410
    %v446 = vsel %vm433, %v333, %v409
    %v447 = vsel %vm434, %v332, %v408
    %v448 = vsel %vm435, %v331, %v407
    %v449 = vsel %vm436, %v330, %v406
    %v450 = vsel %vm437, %v329, %v405
    %v451 = vsel %vm438, %v328, %v404
    %v452 = vsel %vm439, %v327, %v403
    %v453 = vsel %vm440, %v326, %v402
    %v454 = vsel %vm441, %v325, %v401
    %v455 = vsel %vm95, 1, 0
    %v456 = vsel %vm96, 1, 0
    %v457 = vperm.slane %v455, 0
    %v458 = vperm.slane %v455, 1
    %v459 = vperm.slane %v455, 2
    %v460 = vperm.slane %v455, 3
    %v461 = vperm.slane %v455, 4
    %v462 = vperm.slane %v455, 5
    %v463 = vperm.slane %v455, 6
    %v464 = vperm.slane %v455, 7
    %v465 = vperm.slane %v456, 0
    %v466 = vperm.slane %v456, 1
    %v467 = vperm.slane %v456, 2
    %v468 = vperm.slane %v456, 3
    %v469 = vperm.slane %v456, 4
    %vm470 = vcmp.eq.s32.totalorder %v457, 1
    %vm471 = vcmp.eq.s32.totalorder %v458, 1
    %vm472 = vcmp.eq.s32.totalorder %v459, 1
    %vm473 = vcmp.eq.s32.totalorder %v460, 1
    %vm474 = vcmp.eq.s32.totalorder %v461, 1
    %vm475 = vcmp.eq.s32.totalorder %v462, 1
    %vm476 = vcmp.eq.s32.totalorder %v463, 1
    %vm477 = vcmp.eq.s32.totalorder %v464, 1
    %vm478 = vcmp.eq.s32.totalorder %v465, 1
    %vm479 = vcmp.eq.s32.totalorder %v466, 1
    %vm480 = vcmp.eq.s32.totalorder %v467, 1
    %vm481 = vcmp.eq.s32.totalorder %v468, 1
    %vm482 = vcmp.eq.s32.totalorder %v469, 1
    %v483 = vsel %vm470, %v261, %v442
    %v484 = vsel %vm471, %v260, %v443
    %v485 = vsel %vm472, %v259, %v444
    %v486 = vsel %vm473, %v258, %v445
    %v487 = vsel %vm474, %v257, %v446
    %v488 = vsel %vm475, %v256, %v447
    %v489 = vsel %vm476, %v255, %v448
    %v490 = vsel %vm477, %v254, %v449
    %v491 = vsel %vm478, %v253, %v450
    %v492 = vsel %vm479, %v252, %v451
    %v493 = vsel %vm480, %v251, %v452
    %v494 = vsel %vm481, %v250, %v453
    %v495 = vsel %vm482, %v249, %v454
    %v508 = vrot.slane %v484, 4
    %v509 = vrot.slane %v486, 4
    %v510 = vrot.slane %v488, 4
    %v511 = vrot.slane %v490, 4
    %v512 = vrot.slane %v492, 4
    %v513 = vrot.slane %v494, 4
    %vm514 = vcmask 1043456
    %v515 = vsel %vm514, %v483, %v508
    %v516 = vsel %vm514, %v485, %v509
    %v517 = vsel %vm514, %v487, %v510
    %v518 = vsel %vm514, %v489, %v511
    %v519 = vsel %vm514, %v491, %v512
    %v520 = vsel %vm514, %v493, %v513
    %v527 = vmul.f32 %v56, %v515
    %v528 = vmul.f32 %v57, %v516
    %v529 = vmul.f32 %v58, %v517
    %v530 = vmul.f32 %v59, %v518
    %v531 = vmul.f32 %v60, %v519
    %v532 = vmul.f32 %v61, %v520
    %v533 = vmul.f32 %v62, %v495
    %v534 = vsub.f32 %v527, %v63
    %v535 = vsub.f32 %v528, %v64
    %v536 = vsub.f32 %v529, %v65
    %v537 = vsub.f32 %v530, %v66
    %v538 = vsub.f32 %v531, %v67
    %v539 = vsub.f32 %v532, %v68
    %v540 = vsub.f32 %v533, %v69
    %v541 = vmul.f32 %v534, %v534
    %v542 = vmul.f32 %v535, %v535
    %v543 = vmul.f32 %v536, %v536
    %v544 = vmul.f32 %v537, %v537
    %v545 = vmul.f32 %v538, %v538
    %v546 = vmul.f32 %v539, %v539
    %v547 = vmul.f32 %v540, %v540
    %v548 = vsel %vm85, 1, 0
    %v549 = vsel %vm86, 1, 0
    %v550 = vperm.slane %v548, 0
    %v551 = vperm.slane %v548, 1
    %v552 = vperm.slane %v548, 2
    %v553 = vperm.slane %v548, 3
    %v554 = vperm.slane %v548, 4
    %v555 = vperm.slane %v548, 5
    %v556 = vperm.slane %v548, 6
    %v557 = vperm.slane %v548, 7
    %v558 = vperm.slane %v549, 0
    %v559 = vperm.slane %v549, 1
    %v560 = vperm.slane %v549, 2
    %v561 = vperm.slane %v549, 3
    %v562 = vperm.slane %v549, 4
    %vm563 = vcmp.eq.s32.totalorder %v550, 1
    %vm564 = vcmp.eq.s32.totalorder %v551, 1
    %vm565 = vcmp.eq.s32.totalorder %v552, 1
    %vm566 = vcmp.eq.s32.totalorder %v553, 1
    %vm567 = vcmp.eq.s32.totalorder %v554, 1
    %vm568 = vcmp.eq.s32.totalorder %v555, 1
    %vm569 = vcmp.eq.s32.totalorder %v556, 1
    %vm570 = vcmp.eq.s32.totalorder %v557, 1
    %vm571 = vcmp.eq.s32.totalorder %v558, 1
    %vm572 = vcmp.eq.s32.totalorder %v559, 1
    %vm573 = vcmp.eq.s32.totalorder %v560, 1
    %vm574 = vcmp.eq.s32.totalorder %v561, 1
    %vm575 = vcmp.eq.s32.totalorder %v562, 1
    %583 = vst [vmem:[#allocation1] ss:$2 sm:$0xff] %v170
    %s584 = scalar_lea.vmem [#allocation1], 16
    %585 = vst [vmem:[%s584] ss:$2 sm:$0xff] %v171
    %s586 = scalar_lea.vmem [#allocation1], 32
    %587 = vst [vmem:[%s586] ss:$2 sm:$0xff] %v172
    %s588 = scalar_lea.vmem [#allocation1], 48
    %589 = vst [vmem:[%s588] ss:$2 sm:$0xff] %v173
    %v590 = vld.sshfl [vmem:[#allocation1] sm:$0xff pattern:$0x75316420]
    %v591 = vld.sshfl [vmem:[#allocation1 + $0x8] sm:$0xff pattern:$0x75316420]
    %v592 = vld.sshfl [vmem:[#allocation1 + $0x10] sm:$0xff pattern:$0x75316420]
    %v593 = vld.sshfl [vmem:[#allocation1 + $0x18] sm:$0xff pattern:$0x75316420]
    %v594 = vld.sshfl [vmem:[#allocation1 + $0x20] sm:$0xff pattern:$0x75316420]
    %v595 = vld.sshfl [vmem:[#allocation1 + $0x28] sm:$0xff pattern:$0x75316420]
    %v596 = vld.sshfl [vmem:[#allocation1 + $0x30] sm:$0xff pattern:$0x75316420]
    %v597 = vld.sshfl [vmem:[#allocation1 + $0x38] sm:$0xff pattern:$0x75316420]
    %598 = vst [vmem:[#allocation1] ss:$2 sm:$0xff] %v174
    %599 = vst [vmem:[%s584] ss:$2 sm:$0xff] %v175
    %600 = vst [vmem:[%s586] ss:$2 sm:$0xff] %v176
    %v601 = vld.sshfl [vmem:[#allocation1] sm:$0xff pattern:$0x75316420]
    %v602 = vld.sshfl [vmem:[#allocation1 + $0x8] sm:$0xff pattern:$0x75316420]
    %v603 = vld.sshfl [vmem:[#allocation1 + $0x10] sm:$0xff pattern:$0x75316420]
    %v604 = vld.sshfl [vmem:[#allocation1 + $0x18] sm:$0xff pattern:$0x75316420]
    %v605 = vld.sshfl [vmem:[#allocation1 + $0x20] sm:$0xff pattern:$0x75316420]
    %626 = vst [vmem:[#allocation1] ss:$2 sm:$0xff] %v541
    %s627 = scalar_lea.vmem [#allocation1], 16
    %628 = vst [vmem:[%s627] ss:$2 sm:$0xff] %v542
    %s629 = scalar_lea.vmem [#allocation1], 32
    %630 = vst [vmem:[%s629] ss:$2 sm:$0xff] %v543
    %s631 = scalar_lea.vmem [#allocation1], 48
    %632 = vst [vmem:[%s631] ss:$2 sm:$0xff] %v544
    %v633 = vld.sshfl [vmem:[#allocation1] sm:$0xff pattern:$0x75316420]
    %v634 = vld.sshfl [vmem:[#allocation1 + $0x8] sm:$0xff pattern:$0x75316420]
    %v635 = vld.sshfl [vmem:[#allocation1 + $0x10] sm:$0xff pattern:$0x75316420]
    %v636 = vld.sshfl [vmem:[#allocation1 + $0x18] sm:$0xff pattern:$0x75316420]
    %v637 = vld.sshfl [vmem:[#allocation1 + $0x20] sm:$0xff pattern:$0x75316420]
    %v638 = vld.sshfl [vmem:[#allocation1 + $0x28] sm:$0xff pattern:$0x75316420]
    %v639 = vld.sshfl [vmem:[#allocation1 + $0x30] sm:$0xff pattern:$0x75316420]
    %v640 = vld.sshfl [vmem:[#allocation1 + $0x38] sm:$0xff pattern:$0x75316420]
    %641 = vst [vmem:[#allocation1] ss:$2 sm:$0xff] %v545
    %642 = vst [vmem:[%s627] ss:$2 sm:$0xff] %v546
    %643 = vst [vmem:[%s629] ss:$2 sm:$0xff] %v547
    %v644 = vld.sshfl [vmem:[#allocation1] sm:$0xff pattern:$0x75316420]
    %v645 = vld.sshfl [vmem:[#allocation1 + $0x8] sm:$0xff pattern:$0x75316420]
    %v646 = vld.sshfl [vmem:[#allocation1 + $0x10] sm:$0xff pattern:$0x75316420]
    %v647 = vld.sshfl [vmem:[#allocation1 + $0x18] sm:$0xff pattern:$0x75316420]
    %v648 = vld.sshfl [vmem:[#allocation1 + $0x20] sm:$0xff pattern:$0x75316420]
    %v662 = vsel %vm563, %v590, %v633
    %v663 = vsel %vm564, %v591, %v634
    %v664 = vsel %vm565, %v592, %v635
    %v665 = vsel %vm566, %v593, %v636
    %v666 = vsel %vm567, %v594, %v637
    %v667 = vsel %vm568, %v595, %v638
    %v668 = vsel %vm569, %v596, %v639
    %v669 = vsel %vm570, %v597, %v640
    %v670 = vsel %vm571, %v601, %v644
    %v671 = vsel %vm572, %v602, %v645
    %v672 = vsel %vm573, %v603, %v646
    %v673 = vsel %vm574, %v604, %v647
    %v674 = vsel %vm575, %v605, %v648
    %v677 = vperm.slane %v72, 0
    %v678 = vperm.slane %v72, 1
    %v679 = vperm.slane %v72, 2
    %v680 = vperm.slane %v72, 3
    %v681 = vperm.slane %v72, 4
    %v682 = vperm.slane %v72, 5
    %v683 = vperm.slane %v72, 6
    %v684 = vperm.slane %v72, 7
    %v685 = vperm.slane %v76, 0
    %v686 = vperm.slane %v76, 1
    %v687 = vperm.slane %v76, 2
    %v688 = vperm.slane %v76, 3
    %v689 = vperm.slane %v76, 4
    %v703 = vmul.f32 %v662, %v677
    %v704 = vmul.f32 %v663, %v678
    %v705 = vmul.f32 %v664, %v679
    %v706 = vmul.f32 %v665, %v680
    %v707 = vmul.f32 %v666, %v681
    %v708 = vmul.f32 %v667, %v682
    %v709 = vmul.f32 %v668, %v683
    %v710 = vmul.f32 %v669, %v684
    %v711 = vmul.f32 %v670, %v685
    %v712 = vmul.f32 %v671, %v686
    %v713 = vmul.f32 %v672, %v687
    %v714 = vmul.f32 %v673, %v688
    %v715 = vmul.f32 %v674, %v689
    %v716 = vlaneseq
    %v717 = vshrl.u32 %v716, 7
    %vm718 = vcmp.eq.s32.totalorder %v717, 0
    %v719 = vsel %vm718, 1, 0
    %v720 = vcvt.s32.f32 %v719
    %vm721 = vcmask 31744
    %v723 = vsel %vm721, %v720, 0
    %v726 = vsel %vm514, %v703, 0
    %v729 = vsel %vm514, %v704, 0
    %v732 = vsel %vm514, %v705, 0
    %v735 = vsel %vm514, %v706, 0
    %v738 = vsel %vm514, %v707, 0
    %v741 = vsel %vm514, %v708, 0
    %v744 = vsel %vm514, %v709, 0
    %v747 = vsel %vm514, %v710, 0
    %v750 = vsel %vm514, %v711, 0
    %v753 = vsel %vm514, %v712, 0
    %v756 = vsel %vm514, %v713, 0
    %v759 = vsel %vm514, %v714, 0
    %v762 = vsel %vm514, %v715, 0
    %764 = vmatpush.msra.mxu0 0.0
    %765 = vmatpush.msra.mxu0 0.0
    %766 = vmatpush.msra.mxu0 0.0
    %767 = vmatpush.msra.mxu0 0.0
    %768 = vmatpush.msra.mxu0 0.0
    %769 = vmatpush.msra.mxu0 0.0
    %770 = vmatpush.msra.mxu0 0.0
    %771 = vmatpush.msra.mxu0 0.0
    %772 = vmatpush.msra.mxu0 0.0
    %773 = vmatpush.msra.mxu0 0.0
    %774 = vmatpush.msra.mxu0 0.0
    %775 = vmatpush.msra.mxu0 0.0
    %776 = vmatpush.msra.mxu0 0.0
    %777 = vmatpush.msra.mxu0 0.0
    %778 = vmatpush.msra.mxu0 0.0
    %v779 = vand.u32 %v726, 4294901760
    %780 = vmatpush.msra.mxu0 %v779
    %v781 = vand.u32 %v723, 4294901760
    %v782 = vsub.f32 %v723, %v781
    %v783 = vand.u32 %v782, 4294901760
    %v784 = vsub.f32 %v782, %v783
    %v785 = vand.u32 %v784, 4294901760
    %786 = vmatmul.f32.gmra.mxu0 %v785
    %v787 = vpop.f32.mrf.mxu0
    %v788 = vadd.f32 0.0, %v787
    %789 = vdwg.mxu0
    %790 = vmatpush.msra.mxu0 0.0
    %791 = vmatpush.msra.mxu0 0.0
    %792 = vmatpush.msra.mxu0 0.0
    %793 = vmatpush.msra.mxu0 0.0
    %794 = vmatpush.msra.mxu0 0.0
    %795 = vmatpush.msra.mxu0 0.0
    %796 = vmatpush.msra.mxu0 0.0
    %797 = vmatpush.msra.mxu0 0.0
    %798 = vmatpush.msra.mxu0 0.0
    %799 = vmatpush.msra.mxu0 0.0
    %800 = vmatpush.msra.mxu0 0.0
    %801 = vmatpush.msra.mxu0 0.0
    %802 = vmatpush.msra.mxu0 0.0
    %803 = vmatpush.msra.mxu0 0.0
    %804 = vmatpush.msra.mxu0 0.0
    %v805 = vand.u32 %v726, 4294901760
    %v806 = vsub.f32 %v726, %v805
    %v807 = vand.u32 %v806, 4294901760
    %v808 = vsub.f32 %v806, %v807
    %v809 = vand.u32 %v808, 4294901760
    %810 = vmatpush.msra.mxu0 %v809
    %v811 = vand.u32 %v723, 4294901760
    %812 = vmatmul.f32.gmra.mxu0 %v811
    %v813 = vpop.f32.mrf.mxu0
    %v814 = vadd.f32 %v788, %v813
    %815 = vdwg.mxu0
    %816 = vmatpush.msra.mxu0 0.0
    %817 = vmatpush.msra.mxu0 0.0
    %818 = vmatpush.msra.mxu0 0.0
    %819 = vmatpush.msra.mxu0 0.0
    %820 = vmatpush.msra.mxu0 0.0
    %821 = vmatpush.msra.mxu0 0.0
    %822 = vmatpush.msra.mxu0 0.0
    %823 = vmatpush.msra.mxu0 0.0
    %824 = vmatpush.msra.mxu0 0.0
    %825 = vmatpush.msra.mxu0 0.0
    %826 = vmatpush.msra.mxu0 0.0
    %827 = vmatpush.msra.mxu0 0.0
    %828 = vmatpush.msra.mxu0 0.0
    %829 = vmatpush.msra.mxu0 0.0
    %830 = vmatpush.msra.mxu0 0.0
    %v831 = vand.u32 %v726, 4294901760
    %v832 = vsub.f32 %v726, %v831
    %833 = vmatpush.msra.mxu0 %v832
    %v834 = vand.u32 %v723, 4294901760
    %v835 = vsub.f32 %v723, %v834
    %836 = vmatmul.f32.gmra.mxu0 %v835
    %v837 = vpop.f32.mrf.mxu0
    %v838 = vadd.f32 %v814, %v837
    %839 = vdwg.mxu0
    %840 = vmatpush.msra.mxu0 0.0
    %841 = vmatpush.msra.mxu0 0.0
    %842 = vmatpush.msra.mxu0 0.0
    %843 = vmatpush.msra.mxu0 0.0
    %844 = vmatpush.msra.mxu0 0.0
    %845 = vmatpush.msra.mxu0 0.0
    %846 = vmatpush.msra.mxu0 0.0
    %847 = vmatpush.msra.mxu0 0.0
    %848 = vmatpush.msra.mxu0 0.0
    %849 = vmatpush.msra.mxu0 0.0
    %850 = vmatpush.msra.mxu0 0.0
    %851 = vmatpush.msra.mxu0 0.0
    %852 = vmatpush.msra.mxu0 0.0
    %853 = vmatpush.msra.mxu0 0.0
    %854 = vmatpush.msra.mxu0 0.0
    %v855 = vand.u32 %v726, 4294901760
    %856 = vmatpush.msra.mxu0 %v855
    %v857 = vand.u32 %v723, 4294901760
    %v858 = vsub.f32 %v723, %v857
    %v859 = vand.u32 %v858, 4294901760
    %860 = vmatmul.f32.gmra.mxu0 %v859
    %v861 = vpop.f32.mrf.mxu0
    %v862 = vadd.f32 %v838, %v861
    %863 = vdwg.mxu0
    %864 = vmatpush.msra.mxu0 0.0
    %865 = vmatpush.msra.mxu0 0.0
    %866 = vmatpush.msra.mxu0 0.0
    %867 = vmatpush.msra.mxu0 0.0
    %868 = vmatpush.msra.mxu0 0.0
    %869 = vmatpush.msra.mxu0 0.0
    %870 = vmatpush.msra.mxu0 0.0
    %871 = vmatpush.msra.mxu0 0.0
    %872 = vmatpush.msra.mxu0 0.0
    %873 = vmatpush.msra.mxu0 0.0
    %874 = vmatpush.msra.mxu0 0.0
    %875 = vmatpush.msra.mxu0 0.0
    %876 = vmatpush.msra.mxu0 0.0
    %877 = vmatpush.msra.mxu0 0.0
    %878 = vmatpush.msra.mxu0 0.0
    %v879 = vand.u32 %v726, 4294901760
    %v880 = vsub.f32 %v726, %v879
    %v881 = vand.u32 %v880, 4294901760
    %882 = vmatpush.msra.mxu0 %v881
    %v883 = vand.u32 %v723, 4294901760
    %884 = vmatmul.f32.gmra.mxu0 %v883
    %v885 = vpop.f32.mrf.mxu0
    %v886 = vadd.f32 %v862, %v885
    %887 = vdwg.mxu0
    %888 = vmatpush.msra.mxu0 0.0
    %889 = vmatpush.msra.mxu0 0.0
    %890 = vmatpush.msra.mxu0 0.0
    %891 = vmatpush.msra.mxu0 0.0
    %892 = vmatpush.msra.mxu0 0.0
    %893 = vmatpush.msra.mxu0 0.0
    %894 = vmatpush.msra.mxu0 0.0
    %895 = vmatpush.msra.mxu0 0.0
    %896 = vmatpush.msra.mxu0 0.0
    %897 = vmatpush.msra.mxu0 0.0
    %898 = vmatpush.msra.mxu0 0.0
    %899 = vmatpush.msra.mxu0 0.0
    %900 = vmatpush.msra.mxu0 0.0
    %901 = vmatpush.msra.mxu0 0.0
    %902 = vmatpush.msra.mxu0 0.0
    %v903 = vand.u32 %v726, 4294901760
    %904 = vmatpush.msra.mxu0 %v903
    %v905 = vand.u32 %v723, 4294901760
    %906 = vmatmul.f32.gmra.mxu0 %v905
    %v907 = vpop.f32.mrf.mxu0
    %v908 = vadd.f32 %v886, %v907
    %909 = vdwg.mxu0
    %910 = vmatpush.msra.mxu0 0.0
    %911 = vmatpush.msra.mxu0 0.0
    %912 = vmatpush.msra.mxu0 0.0
    %913 = vmatpush.msra.mxu0 0.0
    %914 = vmatpush.msra.mxu0 0.0
    %915 = vmatpush.msra.mxu0 0.0
    %916 = vmatpush.msra.mxu0 0.0
    %917 = vmatpush.msra.mxu0 0.0
    %918 = vmatpush.msra.mxu0 0.0
    %919 = vmatpush.msra.mxu0 0.0
    %920 = vmatpush.msra.mxu0 0.0
    %921 = vmatpush.msra.mxu0 0.0
    %922 = vmatpush.msra.mxu0 0.0
    %923 = vmatpush.msra.mxu0 0.0
    %924 = vmatpush.msra.mxu0 0.0
    %v925 = vand.u32 %v729, 4294901760
    %926 = vmatpush.msra.mxu0 %v925
    %v927 = vand.u32 %v723, 4294901760
    %v928 = vsub.f32 %v723, %v927
    %v929 = vand.u32 %v928, 4294901760
    %v930 = vsub.f32 %v928, %v929
    %v931 = vand.u32 %v930, 4294901760
    %932 = vmatmul.f32.gmra.mxu0 %v931
    %v933 = vpop.f32.mrf.mxu0
    %v934 = vadd.f32 0.0, %v933
    %935 = vdwg.mxu0
    %936 = vmatpush.msra.mxu0 0.0
    %937 = vmatpush.msra.mxu0 0.0
    %938 = vmatpush.msra.mxu0 0.0
    %939 = vmatpush.msra.mxu0 0.0
    %940 = vmatpush.msra.mxu0 0.0
    %941 = vmatpush.msra.mxu0 0.0
    %942 = vmatpush.msra.mxu0 0.0
    %943 = vmatpush.msra.mxu0 0.0
    %944 = vmatpush.msra.mxu0 0.0
    %945 = vmatpush.msra.mxu0 0.0
    %946 = vmatpush.msra.mxu0 0.0
    %947 = vmatpush.msra.mxu0 0.0
    %948 = vmatpush.msra.mxu0 0.0
    %949 = vmatpush.msra.mxu0 0.0
    %950 = vmatpush.msra.mxu0 0.0
    %v951 = vand.u32 %v729, 4294901760
    %v952 = vsub.f32 %v729, %v951
    %v953 = vand.u32 %v952, 4294901760
    %v954 = vsub.f32 %v952, %v953
    %v955 = vand.u32 %v954, 4294901760
    %956 = vmatpush.msra.mxu0 %v955
    %v957 = vand.u32 %v723, 4294901760
    %958 = vmatmul.f32.gmra.mxu0 %v957
    %v959 = vpop.f32.mrf.mxu0
    %v960 = vadd.f32 %v934, %v959
    %961 = vdwg.mxu0
    %962 = vmatpush.msra.mxu0 0.0
    %963 = vmatpush.msra.mxu0 0.0
    %964 = vmatpush.msra.mxu0 0.0
    %965 = vmatpush.msra.mxu0 0.0
    %966 = vmatpush.msra.mxu0 0.0
    %967 = vmatpush.msra.mxu0 0.0
    %968 = vmatpush.msra.mxu0 0.0
    %969 = vmatpush.msra.mxu0 0.0
    %970 = vmatpush.msra.mxu0 0.0
    %971 = vmatpush.msra.mxu0 0.0
    %972 = vmatpush.msra.mxu0 0.0
    %973 = vmatpush.msra.mxu0 0.0
    %974 = vmatpush.msra.mxu0 0.0
    %975 = vmatpush.msra.mxu0 0.0
    %976 = vmatpush.msra.mxu0 0.0
    %v977 = vand.u32 %v729, 4294901760
    %v978 = vsub.f32 %v729, %v977
    %979 = vmatpush.msra.mxu0 %v978
    %v980 = vand.u32 %v723, 4294901760
    %v981 = vsub.f32 %v723, %v980
    %982 = vmatmul.f32.gmra.mxu0 %v981
    %v983 = vpop.f32.mrf.mxu0
    %v984 = vadd.f32 %v960, %v983
    %985 = vdwg.mxu0
    %986 = vmatpush.msra.mxu0 0.0
    %987 = vmatpush.msra.mxu0 0.0
    %988 = vmatpush.msra.mxu0 0.0
    %989 = vmatpush.msra.mxu0 0.0
    %990 = vmatpush.msra.mxu0 0.0
    %991 = vmatpush.msra.mxu0 0.0
    %992 = vmatpush.msra.mxu0 0.0
    %993 = vmatpush.msra.mxu0 0.0
    %994 = vmatpush.msra.mxu0 0.0
    %995 = vmatpush.msra.mxu0 0.0
    %996 = vmatpush.msra.mxu0 0.0
    %997 = vmatpush.msra.mxu0 0.0
    %998 = vmatpush.msra.mxu0 0.0
    %999 = vmatpush.msra.mxu0 0.0
    %1000 = vmatpush.msra.mxu0 0.0
    %v1001 = vand.u32 %v729, 4294901760
    %1002 = vmatpush.msra.mxu0 %v1001
    %v1003 = vand.u32 %v723, 4294901760
    %v1004 = vsub.f32 %v723, %v1003
    %v1005 = vand.u32 %v1004, 4294901760
    %1006 = vmatmul.f32.gmra.mxu0 %v1005
    %v1007 = vpop.f32.mrf.mxu0
    %v1008 = vadd.f32 %v984, %v1007
    %1009 = vdwg.mxu0
    %1010 = vmatpush.msra.mxu0 0.0
    %1011 = vmatpush.msra.mxu0 0.0
    %1012 = vmatpush.msra.mxu0 0.0
    %1013 = vmatpush.msra.mxu0 0.0
    %1014 = vmatpush.msra.mxu0 0.0
    %1015 = vmatpush.msra.mxu0 0.0
    %1016 = vmatpush.msra.mxu0 0.0
    %1017 = vmatpush.msra.mxu0 0.0
    %1018 = vmatpush.msra.mxu0 0.0
    %1019 = vmatpush.msra.mxu0 0.0
    %1020 = vmatpush.msra.mxu0 0.0
    %1021 = vmatpush.msra.mxu0 0.0
    %1022 = vmatpush.msra.mxu0 0.0
    %1023 = vmatpush.msra.mxu0 0.0
    %1024 = vmatpush.msra.mxu0 0.0
    %v1025 = vand.u32 %v729, 4294901760
    %v1026 = vsub.f32 %v729, %v1025
    %v1027 = vand.u32 %v1026, 4294901760
    %1028 = vmatpush.msra.mxu0 %v1027
    %v1029 = vand.u32 %v723, 4294901760
    %1030 = vmatmul.f32.gmra.mxu0 %v1029
    %v1031 = vpop.f32.mrf.mxu0
    %v1032 = vadd.f32 %v1008, %v1031
    %1033 = vdwg.mxu0
    %1034 = vmatpush.msra.mxu0 0.0
    %1035 = vmatpush.msra.mxu0 0.0
    %1036 = vmatpush.msra.mxu0 0.0
    %1037 = vmatpush.msra.mxu0 0.0
    %1038 = vmatpush.msra.mxu0 0.0
    %1039 = vmatpush.msra.mxu0 0.0
    %1040 = vmatpush.msra.mxu0 0.0
    %1041 = vmatpush.msra.mxu0 0.0
    %1042 = vmatpush.msra.mxu0 0.0
    %1043 = vmatpush.msra.mxu0 0.0
    %1044 = vmatpush.msra.mxu0 0.0
    %1045 = vmatpush.msra.mxu0 0.0
    %1046 = vmatpush.msra.mxu0 0.0
    %1047 = vmatpush.msra.mxu0 0.0
    %1048 = vmatpush.msra.mxu0 0.0
    %v1049 = vand.u32 %v729, 4294901760
    %1050 = vmatpush.msra.mxu0 %v1049
    %v1051 = vand.u32 %v723, 4294901760
    %1052 = vmatmul.f32.gmra.mxu0 %v1051
    %v1053 = vpop.f32.mrf.mxu0
    %v1054 = vadd.f32 %v1032, %v1053
    %1055 = vdwg.mxu0
    %1056 = vmatpush.msra.mxu0 0.0
    %1057 = vmatpush.msra.mxu0 0.0
    %1058 = vmatpush.msra.mxu0 0.0
    %1059 = vmatpush.msra.mxu0 0.0
    %1060 = vmatpush.msra.mxu0 0.0
    %1061 = vmatpush.msra.mxu0 0.0
    %1062 = vmatpush.msra.mxu0 0.0
    %1063 = vmatpush.msra.mxu0 0.0
    %1064 = vmatpush.msra.mxu0 0.0
    %1065 = vmatpush.msra.mxu0 0.0
    %1066 = vmatpush.msra.mxu0 0.0
    %1067 = vmatpush.msra.mxu0 0.0
    %1068 = vmatpush.msra.mxu0 0.0
    %1069 = vmatpush.msra.mxu0 0.0
    %1070 = vmatpush.msra.mxu0 0.0
    %v1071 = vand.u32 %v732, 4294901760
    %1072 = vmatpush.msra.mxu0 %v1071
    %v1073 = vand.u32 %v723, 4294901760
    %v1074 = vsub.f32 %v723, %v1073
    %v1075 = vand.u32 %v1074, 4294901760
    %v1076 = vsub.f32 %v1074, %v1075
    %v1077 = vand.u32 %v1076, 4294901760
    %1078 = vmatmul.f32.gmra.mxu0 %v1077
    %v1079 = vpop.f32.mrf.mxu0
    %v1080 = vadd.f32 0.0, %v1079
    %1081 = vdwg.mxu0
    %1082 = vmatpush.msra.mxu0 0.0
    %1083 = vmatpush.msra.mxu0 0.0
    %1084 = vmatpush.msra.mxu0 0.0
    %1085 = vmatpush.msra.mxu0 0.0
    %1086 = vmatpush.msra.mxu0 0.0
    %1087 = vmatpush.msra.mxu0 0.0
    %1088 = vmatpush.msra.mxu0 0.0
    %1089 = vmatpush.msra.mxu0 0.0
    %1090 = vmatpush.msra.mxu0 0.0
    %1091 = vmatpush.msra.mxu0 0.0
    %1092 = vmatpush.msra.mxu0 0.0
    %1093 = vmatpush.msra.mxu0 0.0
    %1094 = vmatpush.msra.mxu0 0.0
    %1095 = vmatpush.msra.mxu0 0.0
    %1096 = vmatpush.msra.mxu0 0.0
    %v1097 = vand.u32 %v732, 4294901760
    %v1098 = vsub.f32 %v732, %v1097
    %v1099 = vand.u32 %v1098, 4294901760
    %v1100 = vsub.f32 %v1098, %v1099
    %v1101 = vand.u32 %v1100, 4294901760
    %1102 = vmatpush.msra.mxu0 %v1101
    %v1103 = vand.u32 %v723, 4294901760
    %1104 = vmatmul.f32.gmra.mxu0 %v1103
    %v1105 = vpop.f32.mrf.mxu0
    %v1106 = vadd.f32 %v1080, %v1105
    %1107 = vdwg.mxu0
    %1108 = vmatpush.msra.mxu0 0.0
    %1109 = vmatpush.msra.mxu0 0.0
    %1110 = vmatpush.msra.mxu0 0.0
    %1111 = vmatpush.msra.mxu0 0.0
    %1112 = vmatpush.msra.mxu0 0.0
    %1113 = vmatpush.msra.mxu0 0.0
    %1114 = vmatpush.msra.mxu0 0.0
    %1115 = vmatpush.msra.mxu0 0.0
    %1116 = vmatpush.msra.mxu0 0.0
    %1117 = vmatpush.msra.mxu0 0.0
    %1118 = vmatpush.msra.mxu0 0.0
    %1119 = vmatpush.msra.mxu0 0.0
    %1120 = vmatpush.msra.mxu0 0.0
    %1121 = vmatpush.msra.mxu0 0.0
    %1122 = vmatpush.msra.mxu0 0.0
    %v1123 = vand.u32 %v732, 4294901760
    %v1124 = vsub.f32 %v732, %v1123
    %1125 = vmatpush.msra.mxu0 %v1124
    %v1126 = vand.u32 %v723, 4294901760
    %v1127 = vsub.f32 %v723, %v1126
    %1128 = vmatmul.f32.gmra.mxu0 %v1127
    %v1129 = vpop.f32.mrf.mxu0
    %v1130 = vadd.f32 %v1106, %v1129
    %1131 = vdwg.mxu0
    %1132 = vmatpush.msra.mxu0 0.0
    %1133 = vmatpush.msra.mxu0 0.0
    %1134 = vmatpush.msra.mxu0 0.0
    %1135 = vmatpush.msra.mxu0 0.0
    %1136 = vmatpush.msra.mxu0 0.0
    %1137 = vmatpush.msra.mxu0 0.0
    %1138 = vmatpush.msra.mxu0 0.0
    %1139 = vmatpush.msra.mxu0 0.0
    %1140 = vmatpush.msra.mxu0 0.0
    %1141 = vmatpush.msra.mxu0 0.0
    %1142 = vmatpush.msra.mxu0 0.0
    %1143 = vmatpush.msra.mxu0 0.0
    %1144 = vmatpush.msra.mxu0 0.0
    %1145 = vmatpush.msra.mxu0 0.0
    %1146 = vmatpush.msra.mxu0 0.0
    %v1147 = vand.u32 %v732, 4294901760
    %1148 = vmatpush.msra.mxu0 %v1147
    %v1149 = vand.u32 %v723, 4294901760
    %v1150 = vsub.f32 %v723, %v1149
    %v1151 = vand.u32 %v1150, 4294901760
    %1152 = vmatmul.f32.gmra.mxu0 %v1151
    %v1153 = vpop.f32.mrf.mxu0
    %v1154 = vadd.f32 %v1130, %v1153
    %1155 = vdwg.mxu0
    %1156 = vmatpush.msra.mxu0 0.0
    %1157 = vmatpush.msra.mxu0 0.0
    %1158 = vmatpush.msra.mxu0 0.0
    %1159 = vmatpush.msra.mxu0 0.0
    %1160 = vmatpush.msra.mxu0 0.0
    %1161 = vmatpush.msra.mxu0 0.0
    %1162 = vmatpush.msra.mxu0 0.0
    %1163 = vmatpush.msra.mxu0 0.0
    %1164 = vmatpush.msra.mxu0 0.0
    %1165 = vmatpush.msra.mxu0 0.0
    %1166 = vmatpush.msra.mxu0 0.0
    %1167 = vmatpush.msra.mxu0 0.0
    %1168 = vmatpush.msra.mxu0 0.0
    %1169 = vmatpush.msra.mxu0 0.0
    %1170 = vmatpush.msra.mxu0 0.0
    %v1171 = vand.u32 %v732, 4294901760
    %v1172 = vsub.f32 %v732, %v1171
    %v1173 = vand.u32 %v1172, 4294901760
    %1174 = vmatpush.msra.mxu0 %v1173
    %v1175 = vand.u32 %v723, 4294901760
    %1176 = vmatmul.f32.gmra.mxu0 %v1175
    %v1177 = vpop.f32.mrf.mxu0
    %v1178 = vadd.f32 %v1154, %v1177
    %1179 = vdwg.mxu0
    %1180 = vmatpush.msra.mxu0 0.0
    %1181 = vmatpush.msra.mxu0 0.0
    %1182 = vmatpush.msra.mxu0 0.0
    %1183 = vmatpush.msra.mxu0 0.0
    %1184 = vmatpush.msra.mxu0 0.0
    %1185 = vmatpush.msra.mxu0 0.0
    %1186 = vmatpush.msra.mxu0 0.0
    %1187 = vmatpush.msra.mxu0 0.0
    %1188 = vmatpush.msra.mxu0 0.0
    %1189 = vmatpush.msra.mxu0 0.0
    %1190 = vmatpush.msra.mxu0 0.0
    %1191 = vmatpush.msra.mxu0 0.0
    %1192 = vmatpush.msra.mxu0 0.0
    %1193 = vmatpush.msra.mxu0 0.0
    %1194 = vmatpush.msra.mxu0 0.0
    %v1195 = vand.u32 %v732, 4294901760
    %1196 = vmatpush.msra.mxu0 %v1195
    %v1197 = vand.u32 %v723, 4294901760
    %1198 = vmatmul.f32.gmra.mxu0 %v1197
    %v1199 = vpop.f32.mrf.mxu0
    %v1200 = vadd.f32 %v1178, %v1199
    %1201 = vdwg.mxu0
    %1202 = vmatpush.msra.mxu0 0.0
    %1203 = vmatpush.msra.mxu0 0.0
    %1204 = vmatpush.msra.mxu0 0.0
    %1205 = vmatpush.msra.mxu0 0.0
    %1206 = vmatpush.msra.mxu0 0.0
    %1207 = vmatpush.msra.mxu0 0.0
    %1208 = vmatpush.msra.mxu0 0.0
    %1209 = vmatpush.msra.mxu0 0.0
    %1210 = vmatpush.msra.mxu0 0.0
    %1211 = vmatpush.msra.mxu0 0.0
    %1212 = vmatpush.msra.mxu0 0.0
    %1213 = vmatpush.msra.mxu0 0.0
    %1214 = vmatpush.msra.mxu0 0.0
    %1215 = vmatpush.msra.mxu0 0.0
    %1216 = vmatpush.msra.mxu0 0.0
    %v1217 = vand.u32 %v735, 4294901760
    %1218 = vmatpush.msra.mxu0 %v1217
    %v1219 = vand.u32 %v723, 4294901760
    %v1220 = vsub.f32 %v723, %v1219
    %v1221 = vand.u32 %v1220, 4294901760
    %v1222 = vsub.f32 %v1220, %v1221
    %v1223 = vand.u32 %v1222, 4294901760
    %1224 = vmatmul.f32.gmra.mxu0 %v1223
    %v1225 = vpop.f32.mrf.mxu0
    %v1226 = vadd.f32 0.0, %v1225
    %1227 = vdwg.mxu0
    %1228 = vmatpush.msra.mxu0 0.0
    %1229 = vmatpush.msra.mxu0 0.0
    %1230 = vmatpush.msra.mxu0 0.0
    %1231 = vmatpush.msra.mxu0 0.0
    %1232 = vmatpush.msra.mxu0 0.0
    %1233 = vmatpush.msra.mxu0 0.0
    %1234 = vmatpush.msra.mxu0 0.0
    %1235 = vmatpush.msra.mxu0 0.0
    %1236 = vmatpush.msra.mxu0 0.0
    %1237 = vmatpush.msra.mxu0 0.0
    %1238 = vmatpush.msra.mxu0 0.0
    %1239 = vmatpush.msra.mxu0 0.0
    %1240 = vmatpush.msra.mxu0 0.0
    %1241 = vmatpush.msra.mxu0 0.0
    %1242 = vmatpush.msra.mxu0 0.0
    %v1243 = vand.u32 %v735, 4294901760
    %v1244 = vsub.f32 %v735, %v1243
    %v1245 = vand.u32 %v1244, 4294901760
    %v1246 = vsub.f32 %v1244, %v1245
    %v1247 = vand.u32 %v1246, 4294901760
    %1248 = vmatpush.msra.mxu0 %v1247
    %v1249 = vand.u32 %v723, 4294901760
    %1250 = vmatmul.f32.gmra.mxu0 %v1249
    %v1251 = vpop.f32.mrf.mxu0
    %v1252 = vadd.f32 %v1226, %v1251
    %1253 = vdwg.mxu0
    %1254 = vmatpush.msra.mxu0 0.0
    %1255 = vmatpush.msra.mxu0 0.0
    %1256 = vmatpush.msra.mxu0 0.0
    %1257 = vmatpush.msra.mxu0 0.0
    %1258 = vmatpush.msra.mxu0 0.0
    %1259 = vmatpush.msra.mxu0 0.0
    %1260 = vmatpush.msra.mxu0 0.0
    %1261 = vmatpush.msra.mxu0 0.0
    %1262 = vmatpush.msra.mxu0 0.0
    %1263 = vmatpush.msra.mxu0 0.0
    %1264 = vmatpush.msra.mxu0 0.0
    %1265 = vmatpush.msra.mxu0 0.0
    %1266 = vmatpush.msra.mxu0 0.0
    %1267 = vmatpush.msra.mxu0 0.0
    %1268 = vmatpush.msra.mxu0 0.0
    %v1269 = vand.u32 %v735, 4294901760
    %v1270 = vsub.f32 %v735, %v1269
    %1271 = vmatpush.msra.mxu0 %v1270
    %v1272 = vand.u32 %v723, 4294901760
    %v1273 = vsub.f32 %v723, %v1272
    %1274 = vmatmul.f32.gmra.mxu0 %v1273
    %v1275 = vpop.f32.mrf.mxu0
    %v1276 = vadd.f32 %v1252, %v1275
    %1277 = vdwg.mxu0
    %1278 = vmatpush.msra.mxu0 0.0
    %1279 = vmatpush.msra.mxu0 0.0
    %1280 = vmatpush.msra.mxu0 0.0
    %1281 = vmatpush.msra.mxu0 0.0
    %1282 = vmatpush.msra.mxu0 0.0
    %1283 = vmatpush.msra.mxu0 0.0
    %1284 = vmatpush.msra.mxu0 0.0
    %1285 = vmatpush.msra.mxu0 0.0
    %1286 = vmatpush.msra.mxu0 0.0
    %1287 = vmatpush.msra.mxu0 0.0
    %1288 = vmatpush.msra.mxu0 0.0
    %1289 = vmatpush.msra.mxu0 0.0
    %1290 = vmatpush.msra.mxu0 0.0
    %1291 = vmatpush.msra.mxu0 0.0
    %1292 = vmatpush.msra.mxu0 0.0
    %v1293 = vand.u32 %v735, 4294901760
    %1294 = vmatpush.msra.mxu0 %v1293
    %v1295 = vand.u32 %v723, 4294901760
    %v1296 = vsub.f32 %v723, %v1295
    %v1297 = vand.u32 %v1296, 4294901760
    %1298 = vmatmul.f32.gmra.mxu0 %v1297
    %v1299 = vpop.f32.mrf.mxu0
    %v1300 = vadd.f32 %v1276, %v1299
    %1301 = vdwg.mxu0
    %1302 = vmatpush.msra.mxu0 0.0
    %1303 = vmatpush.msra.mxu0 0.0
    %1304 = vmatpush.msra.mxu0 0.0
    %1305 = vmatpush.msra.mxu0 0.0
    %1306 = vmatpush.msra.mxu0 0.0
    %1307 = vmatpush.msra.mxu0 0.0
    %1308 = vmatpush.msra.mxu0 0.0
    %1309 = vmatpush.msra.mxu0 0.0
    %1310 = vmatpush.msra.mxu0 0.0
    %1311 = vmatpush.msra.mxu0 0.0
    %1312 = vmatpush.msra.mxu0 0.0
    %1313 = vmatpush.msra.mxu0 0.0
    %1314 = vmatpush.msra.mxu0 0.0
    %1315 = vmatpush.msra.mxu0 0.0
    %1316 = vmatpush.msra.mxu0 0.0
    %v1317 = vand.u32 %v735, 4294901760
    %v1318 = vsub.f32 %v735, %v1317
    %v1319 = vand.u32 %v1318, 4294901760
    %1320 = vmatpush.msra.mxu0 %v1319
    %v1321 = vand.u32 %v723, 4294901760
    %1322 = vmatmul.f32.gmra.mxu0 %v1321
    %v1323 = vpop.f32.mrf.mxu0
    %v1324 = vadd.f32 %v1300, %v1323
    %1325 = vdwg.mxu0
    %1326 = vmatpush.msra.mxu0 0.0
    %1327 = vmatpush.msra.mxu0 0.0
    %1328 = vmatpush.msra.mxu0 0.0
    %1329 = vmatpush.msra.mxu0 0.0
    %1330 = vmatpush.msra.mxu0 0.0
    %1331 = vmatpush.msra.mxu0 0.0
    %1332 = vmatpush.msra.mxu0 0.0
    %1333 = vmatpush.msra.mxu0 0.0
    %1334 = vmatpush.msra.mxu0 0.0
    %1335 = vmatpush.msra.mxu0 0.0
    %1336 = vmatpush.msra.mxu0 0.0
    %1337 = vmatpush.msra.mxu0 0.0
    %1338 = vmatpush.msra.mxu0 0.0
    %1339 = vmatpush.msra.mxu0 0.0
    %1340 = vmatpush.msra.mxu0 0.0
    %v1341 = vand.u32 %v735, 4294901760
    %1342 = vmatpush.msra.mxu0 %v1341
    %v1343 = vand.u32 %v723, 4294901760
    %1344 = vmatmul.f32.gmra.mxu0 %v1343
    %v1345 = vpop.f32.mrf.mxu0
    %v1346 = vadd.f32 %v1324, %v1345
    %1347 = vdwg.mxu0
    %1348 = vmatpush.msra.mxu0 0.0
    %1349 = vmatpush.msra.mxu0 0.0
    %1350 = vmatpush.msra.mxu0 0.0
    %1351 = vmatpush.msra.mxu0 0.0
    %1352 = vmatpush.msra.mxu0 0.0
    %1353 = vmatpush.msra.mxu0 0.0
    %1354 = vmatpush.msra.mxu0 0.0
    %1355 = vmatpush.msra.mxu0 0.0
    %1356 = vmatpush.msra.mxu0 0.0
    %1357 = vmatpush.msra.mxu0 0.0
    %1358 = vmatpush.msra.mxu0 0.0
    %1359 = vmatpush.msra.mxu0 0.0
    %1360 = vmatpush.msra.mxu0 0.0
    %1361 = vmatpush.msra.mxu0 0.0
    %1362 = vmatpush.msra.mxu0 0.0
    %v1363 = vand.u32 %v738, 4294901760
    %1364 = vmatpush.msra.mxu0 %v1363
    %v1365 = vand.u32 %v723, 4294901760
    %v1366 = vsub.f32 %v723, %v1365
    %v1367 = vand.u32 %v1366, 4294901760
    %v1368 = vsub.f32 %v1366, %v1367
    %v1369 = vand.u32 %v1368, 4294901760
    %1370 = vmatmul.f32.gmra.mxu0 %v1369
    %v1371 = vpop.f32.mrf.mxu0
    %v1372 = vadd.f32 0.0, %v1371
    %1373 = vdwg.mxu0
    %1374 = vmatpush.msra.mxu0 0.0
    %1375 = vmatpush.msra.mxu0 0.0
    %1376 = vmatpush.msra.mxu0 0.0
    %1377 = vmatpush.msra.mxu0 0.0
    %1378 = vmatpush.msra.mxu0 0.0
    %1379 = vmatpush.msra.mxu0 0.0
    %1380 = vmatpush.msra.mxu0 0.0
    %1381 = vmatpush.msra.mxu0 0.0
    %1382 = vmatpush.msra.mxu0 0.0
    %1383 = vmatpush.msra.mxu0 0.0
    %1384 = vmatpush.msra.mxu0 0.0
    %1385 = vmatpush.msra.mxu0 0.0
    %1386 = vmatpush.msra.mxu0 0.0
    %1387 = vmatpush.msra.mxu0 0.0
    %1388 = vmatpush.msra.mxu0 0.0
    %v1389 = vand.u32 %v738, 4294901760
    %v1390 = vsub.f32 %v738, %v1389
    %v1391 = vand.u32 %v1390, 4294901760
    %v1392 = vsub.f32 %v1390, %v1391
    %v1393 = vand.u32 %v1392, 4294901760
    %1394 = vmatpush.msra.mxu0 %v1393
    %v1395 = vand.u32 %v723, 4294901760
    %1396 = vmatmul.f32.gmra.mxu0 %v1395
    %v1397 = vpop.f32.mrf.mxu0
    %v1398 = vadd.f32 %v1372, %v1397
    %1399 = vdwg.mxu0
    %1400 = vmatpush.msra.mxu0 0.0
    %1401 = vmatpush.msra.mxu0 0.0
    %1402 = vmatpush.msra.mxu0 0.0
    %1403 = vmatpush.msra.mxu0 0.0
    %1404 = vmatpush.msra.mxu0 0.0
    %1405 = vmatpush.msra.mxu0 0.0
    %1406 = vmatpush.msra.mxu0 0.0
    %1407 = vmatpush.msra.mxu0 0.0
    %1408 = vmatpush.msra.mxu0 0.0
    %1409 = vmatpush.msra.mxu0 0.0
    %1410 = vmatpush.msra.mxu0 0.0
    %1411 = vmatpush.msra.mxu0 0.0
    %1412 = vmatpush.msra.mxu0 0.0
    %1413 = vmatpush.msra.mxu0 0.0
    %1414 = vmatpush.msra.mxu0 0.0
    %v1415 = vand.u32 %v738, 4294901760
    %v1416 = vsub.f32 %v738, %v1415
    %1417 = vmatpush.msra.mxu0 %v1416
    %v1418 = vand.u32 %v723, 4294901760
    %v1419 = vsub.f32 %v723, %v1418
    %1420 = vmatmul.f32.gmra.mxu0 %v1419
    %v1421 = vpop.f32.mrf.mxu0
    %v1422 = vadd.f32 %v1398, %v1421
    %1423 = vdwg.mxu0
    %1424 = vmatpush.msra.mxu0 0.0
    %1425 = vmatpush.msra.mxu0 0.0
    %1426 = vmatpush.msra.mxu0 0.0
    %1427 = vmatpush.msra.mxu0 0.0
    %1428 = vmatpush.msra.mxu0 0.0
    %1429 = vmatpush.msra.mxu0 0.0
    %1430 = vmatpush.msra.mxu0 0.0
    %1431 = vmatpush.msra.mxu0 0.0
    %1432 = vmatpush.msra.mxu0 0.0
    %1433 = vmatpush.msra.mxu0 0.0
    %1434 = vmatpush.msra.mxu0 0.0
    %1435 = vmatpush.msra.mxu0 0.0
    %1436 = vmatpush.msra.mxu0 0.0
    %1437 = vmatpush.msra.mxu0 0.0
    %1438 = vmatpush.msra.mxu0 0.0
    %v1439 = vand.u32 %v738, 4294901760
    %1440 = vmatpush.msra.mxu0 %v1439
    %v1441 = vand.u32 %v723, 4294901760
    %v1442 = vsub.f32 %v723, %v1441
    %v1443 = vand.u32 %v1442, 4294901760
    %1444 = vmatmul.f32.gmra.mxu0 %v1443
    %v1445 = vpop.f32.mrf.mxu0
    %v1446 = vadd.f32 %v1422, %v1445
    %1447 = vdwg.mxu0
    %1448 = vmatpush.msra.mxu0 0.0
    %1449 = vmatpush.msra.mxu0 0.0
    %1450 = vmatpush.msra.mxu0 0.0
    %1451 = vmatpush.msra.mxu0 0.0
    %1452 = vmatpush.msra.mxu0 0.0
    %1453 = vmatpush.msra.mxu0 0.0
    %1454 = vmatpush.msra.mxu0 0.0
    %1455 = vmatpush.msra.mxu0 0.0
    %1456 = vmatpush.msra.mxu0 0.0
    %1457 = vmatpush.msra.mxu0 0.0
    %1458 = vmatpush.msra.mxu0 0.0
    %1459 = vmatpush.msra.mxu0 0.0
    %1460 = vmatpush.msra.mxu0 0.0
    %1461 = vmatpush.msra.mxu0 0.0
    %1462 = vmatpush.msra.mxu0 0.0
    %v1463 = vand.u32 %v738, 4294901760
    %v1464 = vsub.f32 %v738, %v1463
    %v1465 = vand.u32 %v1464, 4294901760
    %1466 = vmatpush.msra.mxu0 %v1465
    %v1467 = vand.u32 %v723, 4294901760
    %1468 = vmatmul.f32.gmra.mxu0 %v1467
    %v1469 = vpop.f32.mrf.mxu0
    %v1470 = vadd.f32 %v1446, %v1469
    %1471 = vdwg.mxu0
    %1472 = vmatpush.msra.mxu0 0.0
    %1473 = vmatpush.msra.mxu0 0.0
    %1474 = vmatpush.msra.mxu0 0.0
    %1475 = vmatpush.msra.mxu0 0.0
    %1476 = vmatpush.msra.mxu0 0.0
    %1477 = vmatpush.msra.mxu0 0.0
    %1478 = vmatpush.msra.mxu0 0.0
    %1479 = vmatpush.msra.mxu0 0.0
    %1480 = vmatpush.msra.mxu0 0.0
    %1481 = vmatpush.msra.mxu0 0.0
    %1482 = vmatpush.msra.mxu0 0.0
    %1483 = vmatpush.msra.mxu0 0.0
    %1484 = vmatpush.msra.mxu0 0.0
    %1485 = vmatpush.msra.mxu0 0.0
    %1486 = vmatpush.msra.mxu0 0.0
    %v1487 = vand.u32 %v738, 4294901760
    %1488 = vmatpush.msra.mxu0 %v1487
    %v1489 = vand.u32 %v723, 4294901760
    %1490 = vmatmul.f32.gmra.mxu0 %v1489
    %v1491 = vpop.f32.mrf.mxu0
    %v1492 = vadd.f32 %v1470, %v1491
    %1493 = vdwg.mxu0
    %1494 = vmatpush.msra.mxu0 0.0
    %1495 = vmatpush.msra.mxu0 0.0
    %1496 = vmatpush.msra.mxu0 0.0
    %1497 = vmatpush.msra.mxu0 0.0
    %1498 = vmatpush.msra.mxu0 0.0
    %1499 = vmatpush.msra.mxu0 0.0
    %1500 = vmatpush.msra.mxu0 0.0
    %1501 = vmatpush.msra.mxu0 0.0
    %1502 = vmatpush.msra.mxu0 0.0
    %1503 = vmatpush.msra.mxu0 0.0
    %1504 = vmatpush.msra.mxu0 0.0
    %1505 = vmatpush.msra.mxu0 0.0
    %1506 = vmatpush.msra.mxu0 0.0
    %1507 = vmatpush.msra.mxu0 0.0
    %1508 = vmatpush.msra.mxu0 0.0
    %v1509 = vand.u32 %v741, 4294901760
    %1510 = vmatpush.msra.mxu0 %v1509
    %v1511 = vand.u32 %v723, 4294901760
    %v1512 = vsub.f32 %v723, %v1511
    %v1513 = vand.u32 %v1512, 4294901760
    %v1514 = vsub.f32 %v1512, %v1513
    %v1515 = vand.u32 %v1514, 4294901760
    %1516 = vmatmul.f32.gmra.mxu0 %v1515
    %v1517 = vpop.f32.mrf.mxu0
    %v1518 = vadd.f32 0.0, %v1517
    %1519 = vdwg.mxu0
    %1520 = vmatpush.msra.mxu0 0.0
    %1521 = vmatpush.msra.mxu0 0.0
    %1522 = vmatpush.msra.mxu0 0.0
    %1523 = vmatpush.msra.mxu0 0.0
    %1524 = vmatpush.msra.mxu0 0.0
    %1525 = vmatpush.msra.mxu0 0.0
    %1526 = vmatpush.msra.mxu0 0.0
    %1527 = vmatpush.msra.mxu0 0.0
    %1528 = vmatpush.msra.mxu0 0.0
    %1529 = vmatpush.msra.mxu0 0.0
    %1530 = vmatpush.msra.mxu0 0.0
    %1531 = vmatpush.msra.mxu0 0.0
    %1532 = vmatpush.msra.mxu0 0.0
    %1533 = vmatpush.msra.mxu0 0.0
    %1534 = vmatpush.msra.mxu0 0.0
    %v1535 = vand.u32 %v741, 4294901760
    %v1536 = vsub.f32 %v741, %v1535
    %v1537 = vand.u32 %v1536, 4294901760
    %v1538 = vsub.f32 %v1536, %v1537
    %v1539 = vand.u32 %v1538, 4294901760
    %1540 = vmatpush.msra.mxu0 %v1539
    %v1541 = vand.u32 %v723, 4294901760
    %1542 = vmatmul.f32.gmra.mxu0 %v1541
    %v1543 = vpop.f32.mrf.mxu0
    %v1544 = vadd.f32 %v1518, %v1543
    %1545 = vdwg.mxu0
    %1546 = vmatpush.msra.mxu0 0.0
    %1547 = vmatpush.msra.mxu0 0.0
    %1548 = vmatpush.msra.mxu0 0.0
    %1549 = vmatpush.msra.mxu0 0.0
    %1550 = vmatpush.msra.mxu0 0.0
    %1551 = vmatpush.msra.mxu0 0.0
    %1552 = vmatpush.msra.mxu0 0.0
    %1553 = vmatpush.msra.mxu0 0.0
    %1554 = vmatpush.msra.mxu0 0.0
    %1555 = vmatpush.msra.mxu0 0.0
    %1556 = vmatpush.msra.mxu0 0.0
    %1557 = vmatpush.msra.mxu0 0.0
    %1558 = vmatpush.msra.mxu0 0.0
    %1559 = vmatpush.msra.mxu0 0.0
    %1560 = vmatpush.msra.mxu0 0.0
    %v1561 = vand.u32 %v741, 4294901760
    %v1562 = vsub.f32 %v741, %v1561
    %1563 = vmatpush.msra.mxu0 %v1562
    %v1564 = vand.u32 %v723, 4294901760
    %v1565 = vsub.f32 %v723, %v1564
    %1566 = vmatmul.f32.gmra.mxu0 %v1565
    %v1567 = vpop.f32.mrf.mxu0
    %v1568 = vadd.f32 %v1544, %v1567
    %1569 = vdwg.mxu0
    %1570 = vmatpush.msra.mxu0 0.0
    %1571 = vmatpush.msra.mxu0 0.0
    %1572 = vmatpush.msra.mxu0 0.0
    %1573 = vmatpush.msra.mxu0 0.0
    %1574 = vmatpush.msra.mxu0 0.0
    %1575 = vmatpush.msra.mxu0 0.0
    %1576 = vmatpush.msra.mxu0 0.0
    %1577 = vmatpush.msra.mxu0 0.0
    %1578 = vmatpush.msra.mxu0 0.0
    %1579 = vmatpush.msra.mxu0 0.0
    %1580 = vmatpush.msra.mxu0 0.0
    %1581 = vmatpush.msra.mxu0 0.0
    %1582 = vmatpush.msra.mxu0 0.0
    %1583 = vmatpush.msra.mxu0 0.0
    %1584 = vmatpush.msra.mxu0 0.0
    %v1585 = vand.u32 %v741, 4294901760
    %1586 = vmatpush.msra.mxu0 %v1585
    %v1587 = vand.u32 %v723, 4294901760
    %v1588 = vsub.f32 %v723, %v1587
    %v1589 = vand.u32 %v1588, 4294901760
    %1590 = vmatmul.f32.gmra.mxu0 %v1589
    %v1591 = vpop.f32.mrf.mxu0
    %v1592 = vadd.f32 %v1568, %v1591
    %1593 = vdwg.mxu0
    %1594 = vmatpush.msra.mxu0 0.0
    %1595 = vmatpush.msra.mxu0 0.0
    %1596 = vmatpush.msra.mxu0 0.0
    %1597 = vmatpush.msra.mxu0 0.0
    %1598 = vmatpush.msra.mxu0 0.0
    %1599 = vmatpush.msra.mxu0 0.0
    %1600 = vmatpush.msra.mxu0 0.0
    %1601 = vmatpush.msra.mxu0 0.0
    %1602 = vmatpush.msra.mxu0 0.0
    %1603 = vmatpush.msra.mxu0 0.0
    %1604 = vmatpush.msra.mxu0 0.0
    %1605 = vmatpush.msra.mxu0 0.0
    %1606 = vmatpush.msra.mxu0 0.0
    %1607 = vmatpush.msra.mxu0 0.0
    %1608 = vmatpush.msra.mxu0 0.0
    %v1609 = vand.u32 %v741, 4294901760
    %v1610 = vsub.f32 %v741, %v1609
    %v1611 = vand.u32 %v1610, 4294901760
    %1612 = vmatpush.msra.mxu0 %v1611
    %v1613 = vand.u32 %v723, 4294901760
    %1614 = vmatmul.f32.gmra.mxu0 %v1613
    %v1615 = vpop.f32.mrf.mxu0
    %v1616 = vadd.f32 %v1592, %v1615
    %1617 = vdwg.mxu0
    %1618 = vmatpush.msra.mxu0 0.0
    %1619 = vmatpush.msra.mxu0 0.0
    %1620 = vmatpush.msra.mxu0 0.0
    %1621 = vmatpush.msra.mxu0 0.0
    %1622 = vmatpush.msra.mxu0 0.0
    %1623 = vmatpush.msra.mxu0 0.0
    %1624 = vmatpush.msra.mxu0 0.0
    %1625 = vmatpush.msra.mxu0 0.0
    %1626 = vmatpush.msra.mxu0 0.0
    %1627 = vmatpush.msra.mxu0 0.0
    %1628 = vmatpush.msra.mxu0 0.0
    %1629 = vmatpush.msra.mxu0 0.0
    %1630 = vmatpush.msra.mxu0 0.0
    %1631 = vmatpush.msra.mxu0 0.0
    %1632 = vmatpush.msra.mxu0 0.0
    %v1633 = vand.u32 %v741, 4294901760
    %1634 = vmatpush.msra.mxu0 %v1633
    %v1635 = vand.u32 %v723, 4294901760
    %1636 = vmatmul.f32.gmra.mxu0 %v1635
    %v1637 = vpop.f32.mrf.mxu0
    %v1638 = vadd.f32 %v1616, %v1637
    %1639 = vdwg.mxu0
    %1640 = vmatpush.msra.mxu0 0.0
    %1641 = vmatpush.msra.mxu0 0.0
    %1642 = vmatpush.msra.mxu0 0.0
    %1643 = vmatpush.msra.mxu0 0.0
    %1644 = vmatpush.msra.mxu0 0.0
    %1645 = vmatpush.msra.mxu0 0.0
    %1646 = vmatpush.msra.mxu0 0.0
    %1647 = vmatpush.msra.mxu0 0.0
    %1648 = vmatpush.msra.mxu0 0.0
    %1649 = vmatpush.msra.mxu0 0.0
    %1650 = vmatpush.msra.mxu0 0.0
    %1651 = vmatpush.msra.mxu0 0.0
    %1652 = vmatpush.msra.mxu0 0.0
    %1653 = vmatpush.msra.mxu0 0.0
    %1654 = vmatpush.msra.mxu0 0.0
    %v1655 = vand.u32 %v744, 4294901760
    %1656 = vmatpush.msra.mxu0 %v1655
    %v1657 = vand.u32 %v723, 4294901760
    %v1658 = vsub.f32 %v723, %v1657
    %v1659 = vand.u32 %v1658, 4294901760
    %v1660 = vsub.f32 %v1658, %v1659
    %v1661 = vand.u32 %v1660, 4294901760
    %1662 = vmatmul.f32.gmra.mxu0 %v1661
    %v1663 = vpop.f32.mrf.mxu0
    %v1664 = vadd.f32 0.0, %v1663
    %1665 = vdwg.mxu0
    %1666 = vmatpush.msra.mxu0 0.0
    %1667 = vmatpush.msra.mxu0 0.0
    %1668 = vmatpush.msra.mxu0 0.0
    %1669 = vmatpush.msra.mxu0 0.0
    %1670 = vmatpush.msra.mxu0 0.0
    %1671 = vmatpush.msra.mxu0 0.0
    %1672 = vmatpush.msra.mxu0 0.0
    %1673 = vmatpush.msra.mxu0 0.0
    %1674 = vmatpush.msra.mxu0 0.0
    %1675 = vmatpush.msra.mxu0 0.0
    %1676 = vmatpush.msra.mxu0 0.0
    %1677 = vmatpush.msra.mxu0 0.0
    %1678 = vmatpush.msra.mxu0 0.0
    %1679 = vmatpush.msra.mxu0 0.0
    %1680 = vmatpush.msra.mxu0 0.0
    %v1681 = vand.u32 %v744, 4294901760
    %v1682 = vsub.f32 %v744, %v1681
    %v1683 = vand.u32 %v1682, 4294901760
    %v1684 = vsub.f32 %v1682, %v1683
    %v1685 = vand.u32 %v1684, 4294901760
    %1686 = vmatpush.msra.mxu0 %v1685
    %v1687 = vand.u32 %v723, 4294901760
    %1688 = vmatmul.f32.gmra.mxu0 %v1687
    %v1689 = vpop.f32.mrf.mxu0
    %v1690 = vadd.f32 %v1664, %v1689
    %1691 = vdwg.mxu0
    %1692 = vmatpush.msra.mxu0 0.0
    %1693 = vmatpush.msra.mxu0 0.0
    %1694 = vmatpush.msra.mxu0 0.0
    %1695 = vmatpush.msra.mxu0 0.0
    %1696 = vmatpush.msra.mxu0 0.0
    %1697 = vmatpush.msra.mxu0 0.0
    %1698 = vmatpush.msra.mxu0 0.0
    %1699 = vmatpush.msra.mxu0 0.0
    %1700 = vmatpush.msra.mxu0 0.0
    %1701 = vmatpush.msra.mxu0 0.0
    %1702 = vmatpush.msra.mxu0 0.0
    %1703 = vmatpush.msra.mxu0 0.0
    %1704 = vmatpush.msra.mxu0 0.0
    %1705 = vmatpush.msra.mxu0 0.0
    %1706 = vmatpush.msra.mxu0 0.0
    %v1707 = vand.u32 %v744, 4294901760
    %v1708 = vsub.f32 %v744, %v1707
    %1709 = vmatpush.msra.mxu0 %v1708
    %v1710 = vand.u32 %v723, 4294901760
    %v1711 = vsub.f32 %v723, %v1710
    %1712 = vmatmul.f32.gmra.mxu0 %v1711
    %v1713 = vpop.f32.mrf.mxu0
    %v1714 = vadd.f32 %v1690, %v1713
    %1715 = vdwg.mxu0
    %1716 = vmatpush.msra.mxu0 0.0
    %1717 = vmatpush.msra.mxu0 0.0
    %1718 = vmatpush.msra.mxu0 0.0
    %1719 = vmatpush.msra.mxu0 0.0
    %1720 = vmatpush.msra.mxu0 0.0
    %1721 = vmatpush.msra.mxu0 0.0
    %1722 = vmatpush.msra.mxu0 0.0
    %1723 = vmatpush.msra.mxu0 0.0
    %1724 = vmatpush.msra.mxu0 0.0
    %1725 = vmatpush.msra.mxu0 0.0
    %1726 = vmatpush.msra.mxu0 0.0
    %1727 = vmatpush.msra.mxu0 0.0
    %1728 = vmatpush.msra.mxu0 0.0
    %1729 = vmatpush.msra.mxu0 0.0
    %1730 = vmatpush.msra.mxu0 0.0
    %v1731 = vand.u32 %v744, 4294901760
    %1732 = vmatpush.msra.mxu0 %v1731
    %v1733 = vand.u32 %v723, 4294901760
    %v1734 = vsub.f32 %v723, %v1733
    %v1735 = vand.u32 %v1734, 4294901760
    %1736 = vmatmul.f32.gmra.mxu0 %v1735
    %v1737 = vpop.f32.mrf.mxu0
    %v1738 = vadd.f32 %v1714, %v1737
    %1739 = vdwg.mxu0
    %1740 = vmatpush.msra.mxu0 0.0
    %1741 = vmatpush.msra.mxu0 0.0
    %1742 = vmatpush.msra.mxu0 0.0
    %1743 = vmatpush.msra.mxu0 0.0
    %1744 = vmatpush.msra.mxu0 0.0
    %1745 = vmatpush.msra.mxu0 0.0
    %1746 = vmatpush.msra.mxu0 0.0
    %1747 = vmatpush.msra.mxu0 0.0
    %1748 = vmatpush.msra.mxu0 0.0
    %1749 = vmatpush.msra.mxu0 0.0
    %1750 = vmatpush.msra.mxu0 0.0
    %1751 = vmatpush.msra.mxu0 0.0
    %1752 = vmatpush.msra.mxu0 0.0
    %1753 = vmatpush.msra.mxu0 0.0
    %1754 = vmatpush.msra.mxu0 0.0
    %v1755 = vand.u32 %v744, 4294901760
    %v1756 = vsub.f32 %v744, %v1755
    %v1757 = vand.u32 %v1756, 4294901760
    %1758 = vmatpush.msra.mxu0 %v1757
    %v1759 = vand.u32 %v723, 4294901760
    %1760 = vmatmul.f32.gmra.mxu0 %v1759
    %v1761 = vpop.f32.mrf.mxu0
    %v1762 = vadd.f32 %v1738, %v1761
    %1763 = vdwg.mxu0
    %1764 = vmatpush.msra.mxu0 0.0
    %1765 = vmatpush.msra.mxu0 0.0
    %1766 = vmatpush.msra.mxu0 0.0
    %1767 = vmatpush.msra.mxu0 0.0
    %1768 = vmatpush.msra.mxu0 0.0
    %1769 = vmatpush.msra.mxu0 0.0
    %1770 = vmatpush.msra.mxu0 0.0
    %1771 = vmatpush.msra.mxu0 0.0
    %1772 = vmatpush.msra.mxu0 0.0
    %1773 = vmatpush.msra.mxu0 0.0
    %1774 = vmatpush.msra.mxu0 0.0
    %1775 = vmatpush.msra.mxu0 0.0
    %1776 = vmatpush.msra.mxu0 0.0
    %1777 = vmatpush.msra.mxu0 0.0
    %1778 = vmatpush.msra.mxu0 0.0
    %v1779 = vand.u32 %v744, 4294901760
    %1780 = vmatpush.msra.mxu0 %v1779
    %v1781 = vand.u32 %v723, 4294901760
    %1782 = vmatmul.f32.gmra.mxu0 %v1781
    %v1783 = vpop.f32.mrf.mxu0
    %v1784 = vadd.f32 %v1762, %v1783
    %1785 = vdwg.mxu0
    %1786 = vmatpush.msra.mxu0 0.0
    %1787 = vmatpush.msra.mxu0 0.0
    %1788 = vmatpush.msra.mxu0 0.0
    %1789 = vmatpush.msra.mxu0 0.0
    %1790 = vmatpush.msra.mxu0 0.0
    %1791 = vmatpush.msra.mxu0 0.0
    %1792 = vmatpush.msra.mxu0 0.0
    %1793 = vmatpush.msra.mxu0 0.0
    %1794 = vmatpush.msra.mxu0 0.0
    %1795 = vmatpush.msra.mxu0 0.0
    %1796 = vmatpush.msra.mxu0 0.0
    %1797 = vmatpush.msra.mxu0 0.0
    %1798 = vmatpush.msra.mxu0 0.0
    %1799 = vmatpush.msra.mxu0 0.0
    %1800 = vmatpush.msra.mxu0 0.0
    %v1801 = vand.u32 %v747, 4294901760
    %1802 = vmatpush.msra.mxu0 %v1801
    %v1803 = vand.u32 %v723, 4294901760
    %v1804 = vsub.f32 %v723, %v1803
    %v1805 = vand.u32 %v1804, 4294901760
    %v1806 = vsub.f32 %v1804, %v1805
    %v1807 = vand.u32 %v1806, 4294901760
    %1808 = vmatmul.f32.gmra.mxu0 %v1807
    %v1809 = vpop.f32.mrf.mxu0
    %v1810 = vadd.f32 0.0, %v1809
    %1811 = vdwg.mxu0
    %1812 = vmatpush.msra.mxu0 0.0
    %1813 = vmatpush.msra.mxu0 0.0
    %1814 = vmatpush.msra.mxu0 0.0
    %1815 = vmatpush.msra.mxu0 0.0
    %1816 = vmatpush.msra.mxu0 0.0
    %1817 = vmatpush.msra.mxu0 0.0
    %1818 = vmatpush.msra.mxu0 0.0
    %1819 = vmatpush.msra.mxu0 0.0
    %1820 = vmatpush.msra.mxu0 0.0
    %1821 = vmatpush.msra.mxu0 0.0
    %1822 = vmatpush.msra.mxu0 0.0
    %1823 = vmatpush.msra.mxu0 0.0
    %1824 = vmatpush.msra.mxu0 0.0
    %1825 = vmatpush.msra.mxu0 0.0
    %1826 = vmatpush.msra.mxu0 0.0
    %v1827 = vand.u32 %v747, 4294901760
    %v1828 = vsub.f32 %v747, %v1827
    %v1829 = vand.u32 %v1828, 4294901760
    %v1830 = vsub.f32 %v1828, %v1829
    %v1831 = vand.u32 %v1830, 4294901760
    %1832 = vmatpush.msra.mxu0 %v1831
    %v1833 = vand.u32 %v723, 4294901760
    %1834 = vmatmul.f32.gmra.mxu0 %v1833
    %v1835 = vpop.f32.mrf.mxu0
    %v1836 = vadd.f32 %v1810, %v1835
    %1837 = vdwg.mxu0
    %1838 = vmatpush.msra.mxu0 0.0
    %1839 = vmatpush.msra.mxu0 0.0
    %1840 = vmatpush.msra.mxu0 0.0
    %1841 = vmatpush.msra.mxu0 0.0
    %1842 = vmatpush.msra.mxu0 0.0
    %1843 = vmatpush.msra.mxu0 0.0
    %1844 = vmatpush.msra.mxu0 0.0
    %1845 = vmatpush.msra.mxu0 0.0
    %1846 = vmatpush.msra.mxu0 0.0
    %1847 = vmatpush.msra.mxu0 0.0
    %1848 = vmatpush.msra.mxu0 0.0
    %1849 = vmatpush.msra.mxu0 0.0
    %1850 = vmatpush.msra.mxu0 0.0
    %1851 = vmatpush.msra.mxu0 0.0
    %1852 = vmatpush.msra.mxu0 0.0
    %v1853 = vand.u32 %v747, 4294901760
    %v1854 = vsub.f32 %v747, %v1853
    %1855 = vmatpush.msra.mxu0 %v1854
    %v1856 = vand.u32 %v723, 4294901760
    %v1857 = vsub.f32 %v723, %v1856
    %1858 = vmatmul.f32.gmra.mxu0 %v1857
    %v1859 = vpop.f32.mrf.mxu0
    %v1860 = vadd.f32 %v1836, %v1859
    %1861 = vdwg.mxu0
    %1862 = vmatpush.msra.mxu0 0.0
    %1863 = vmatpush.msra.mxu0 0.0
    %1864 = vmatpush.msra.mxu0 0.0
    %1865 = vmatpush.msra.mxu0 0.0
    %1866 = vmatpush.msra.mxu0 0.0
    %1867 = vmatpush.msra.mxu0 0.0
    %1868 = vmatpush.msra.mxu0 0.0
    %1869 = vmatpush.msra.mxu0 0.0
    %1870 = vmatpush.msra.mxu0 0.0
    %1871 = vmatpush.msra.mxu0 0.0
    %1872 = vmatpush.msra.mxu0 0.0
    %1873 = vmatpush.msra.mxu0 0.0
    %1874 = vmatpush.msra.mxu0 0.0
    %1875 = vmatpush.msra.mxu0 0.0
    %1876 = vmatpush.msra.mxu0 0.0
    %v1877 = vand.u32 %v747, 4294901760
    %1878 = vmatpush.msra.mxu0 %v1877
    %v1879 = vand.u32 %v723, 4294901760
    %v1880 = vsub.f32 %v723, %v1879
    %v1881 = vand.u32 %v1880, 4294901760
    %1882 = vmatmul.f32.gmra.mxu0 %v1881
    %v1883 = vpop.f32.mrf.mxu0
    %v1884 = vadd.f32 %v1860, %v1883
    %1885 = vdwg.mxu0
    %1886 = vmatpush.msra.mxu0 0.0
    %1887 = vmatpush.msra.mxu0 0.0
    %1888 = vmatpush.msra.mxu0 0.0
    %1889 = vmatpush.msra.mxu0 0.0
    %1890 = vmatpush.msra.mxu0 0.0
    %1891 = vmatpush.msra.mxu0 0.0
    %1892 = vmatpush.msra.mxu0 0.0
    %1893 = vmatpush.msra.mxu0 0.0
    %1894 = vmatpush.msra.mxu0 0.0
    %1895 = vmatpush.msra.mxu0 0.0
    %1896 = vmatpush.msra.mxu0 0.0
    %1897 = vmatpush.msra.mxu0 0.0
    %1898 = vmatpush.msra.mxu0 0.0
    %1899 = vmatpush.msra.mxu0 0.0
    %1900 = vmatpush.msra.mxu0 0.0
    %v1901 = vand.u32 %v747, 4294901760
    %v1902 = vsub.f32 %v747, %v1901
    %v1903 = vand.u32 %v1902, 4294901760
    %1904 = vmatpush.msra.mxu0 %v1903
    %v1905 = vand.u32 %v723, 4294901760
    %1906 = vmatmul.f32.gmra.mxu0 %v1905
    %v1907 = vpop.f32.mrf.mxu0
    %v1908 = vadd.f32 %v1884, %v1907
    %1909 = vdwg.mxu0
    %1910 = vmatpush.msra.mxu0 0.0
    %1911 = vmatpush.msra.mxu0 0.0
    %1912 = vmatpush.msra.mxu0 0.0
    %1913 = vmatpush.msra.mxu0 0.0
    %1914 = vmatpush.msra.mxu0 0.0
    %1915 = vmatpush.msra.mxu0 0.0
    %1916 = vmatpush.msra.mxu0 0.0
    %1917 = vmatpush.msra.mxu0 0.0
    %1918 = vmatpush.msra.mxu0 0.0
    %1919 = vmatpush.msra.mxu0 0.0
    %1920 = vmatpush.msra.mxu0 0.0
    %1921 = vmatpush.msra.mxu0 0.0
    %1922 = vmatpush.msra.mxu0 0.0
    %1923 = vmatpush.msra.mxu0 0.0
    %1924 = vmatpush.msra.mxu0 0.0
    %v1925 = vand.u32 %v747, 4294901760
    %1926 = vmatpush.msra.mxu0 %v1925
    %v1927 = vand.u32 %v723, 4294901760
    %1928 = vmatmul.f32.gmra.mxu0 %v1927
    %v1929 = vpop.f32.mrf.mxu0
    %v1930 = vadd.f32 %v1908, %v1929
    %1931 = vdwg.mxu0
    %1932 = vmatpush.msra.mxu0 0.0
    %1933 = vmatpush.msra.mxu0 0.0
    %1934 = vmatpush.msra.mxu0 0.0
    %1935 = vmatpush.msra.mxu0 0.0
    %1936 = vmatpush.msra.mxu0 0.0
    %1937 = vmatpush.msra.mxu0 0.0
    %1938 = vmatpush.msra.mxu0 0.0
    %1939 = vmatpush.msra.mxu0 0.0
    %1940 = vmatpush.msra.mxu0 0.0
    %1941 = vmatpush.msra.mxu0 0.0
    %1942 = vmatpush.msra.mxu0 0.0
    %1943 = vmatpush.msra.mxu0 0.0
    %1944 = vmatpush.msra.mxu0 0.0
    %1945 = vmatpush.msra.mxu0 0.0
    %1946 = vmatpush.msra.mxu0 0.0
    %v1947 = vand.u32 %v750, 4294901760
    %1948 = vmatpush.msra.mxu0 %v1947
    %v1949 = vand.u32 %v723, 4294901760
    %v1950 = vsub.f32 %v723, %v1949
    %v1951 = vand.u32 %v1950, 4294901760
    %v1952 = vsub.f32 %v1950, %v1951
    %v1953 = vand.u32 %v1952, 4294901760
    %1954 = vmatmul.f32.gmra.mxu0 %v1953
    %v1955 = vpop.f32.mrf.mxu0
    %v1956 = vadd.f32 0.0, %v1955
    %1957 = vdwg.mxu0
    %1958 = vmatpush.msra.mxu0 0.0
    %1959 = vmatpush.msra.mxu0 0.0
    %1960 = vmatpush.msra.mxu0 0.0
    %1961 = vmatpush.msra.mxu0 0.0
    %1962 = vmatpush.msra.mxu0 0.0
    %1963 = vmatpush.msra.mxu0 0.0
    %1964 = vmatpush.msra.mxu0 0.0
    %1965 = vmatpush.msra.mxu0 0.0
    %1966 = vmatpush.msra.mxu0 0.0
    %1967 = vmatpush.msra.mxu0 0.0
    %1968 = vmatpush.msra.mxu0 0.0
    %1969 = vmatpush.msra.mxu0 0.0
    %1970 = vmatpush.msra.mxu0 0.0
    %1971 = vmatpush.msra.mxu0 0.0
    %1972 = vmatpush.msra.mxu0 0.0
    %v1973 = vand.u32 %v750, 4294901760
    %v1974 = vsub.f32 %v750, %v1973
    %v1975 = vand.u32 %v1974, 4294901760
    %v1976 = vsub.f32 %v1974, %v1975
    %v1977 = vand.u32 %v1976, 4294901760
    %1978 = vmatpush.msra.mxu0 %v1977
    %v1979 = vand.u32 %v723, 4294901760
    %1980 = vmatmul.f32.gmra.mxu0 %v1979
    %v1981 = vpop.f32.mrf.mxu0
    %v1982 = vadd.f32 %v1956, %v1981
    %1983 = vdwg.mxu0
    %1984 = vmatpush.msra.mxu0 0.0
    %1985 = vmatpush.msra.mxu0 0.0
    %1986 = vmatpush.msra.mxu0 0.0
    %1987 = vmatpush.msra.mxu0 0.0
    %1988 = vmatpush.msra.mxu0 0.0
    %1989 = vmatpush.msra.mxu0 0.0
    %1990 = vmatpush.msra.mxu0 0.0
    %1991 = vmatpush.msra.mxu0 0.0
    %1992 = vmatpush.msra.mxu0 0.0
    %1993 = vmatpush.msra.mxu0 0.0
    %1994 = vmatpush.msra.mxu0 0.0
    %1995 = vmatpush.msra.mxu0 0.0
    %1996 = vmatpush.msra.mxu0 0.0
    %1997 = vmatpush.msra.mxu0 0.0
    %1998 = vmatpush.msra.mxu0 0.0
    %v1999 = vand.u32 %v750, 4294901760
    %v2000 = vsub.f32 %v750, %v1999
    %2001 = vmatpush.msra.mxu0 %v2000
    %v2002 = vand.u32 %v723, 4294901760
    %v2003 = vsub.f32 %v723, %v2002
    %2004 = vmatmul.f32.gmra.mxu0 %v2003
    %v2005 = vpop.f32.mrf.mxu0
    %v2006 = vadd.f32 %v1982, %v2005
    %2007 = vdwg.mxu0
    %2008 = vmatpush.msra.mxu0 0.0
    %2009 = vmatpush.msra.mxu0 0.0
    %2010 = vmatpush.msra.mxu0 0.0
    %2011 = vmatpush.msra.mxu0 0.0
    %2012 = vmatpush.msra.mxu0 0.0
    %2013 = vmatpush.msra.mxu0 0.0
    %2014 = vmatpush.msra.mxu0 0.0
    %2015 = vmatpush.msra.mxu0 0.0
    %2016 = vmatpush.msra.mxu0 0.0
    %2017 = vmatpush.msra.mxu0 0.0
    %2018 = vmatpush.msra.mxu0 0.0
    %2019 = vmatpush.msra.mxu0 0.0
    %2020 = vmatpush.msra.mxu0 0.0
    %2021 = vmatpush.msra.mxu0 0.0
    %2022 = vmatpush.msra.mxu0 0.0
    %v2023 = vand.u32 %v750, 4294901760
    %2024 = vmatpush.msra.mxu0 %v2023
    %v2025 = vand.u32 %v723, 4294901760
    %v2026 = vsub.f32 %v723, %v2025
    %v2027 = vand.u32 %v2026, 4294901760
    %2028 = vmatmul.f32.gmra.mxu0 %v2027
    %v2029 = vpop.f32.mrf.mxu0
    %v2030 = vadd.f32 %v2006, %v2029
    %2031 = vdwg.mxu0
    %2032 = vmatpush.msra.mxu0 0.0
    %2033 = vmatpush.msra.mxu0 0.0
    %2034 = vmatpush.msra.mxu0 0.0
    %2035 = vmatpush.msra.mxu0 0.0
    %2036 = vmatpush.msra.mxu0 0.0
    %2037 = vmatpush.msra.mxu0 0.0
    %2038 = vmatpush.msra.mxu0 0.0
    %2039 = vmatpush.msra.mxu0 0.0
    %2040 = vmatpush.msra.mxu0 0.0
    %2041 = vmatpush.msra.mxu0 0.0
    %2042 = vmatpush.msra.mxu0 0.0
    %2043 = vmatpush.msra.mxu0 0.0
    %2044 = vmatpush.msra.mxu0 0.0
    %2045 = vmatpush.msra.mxu0 0.0
    %2046 = vmatpush.msra.mxu0 0.0
    %v2047 = vand.u32 %v750, 4294901760
    %v2048 = vsub.f32 %v750, %v2047
    %v2049 = vand.u32 %v2048, 4294901760
    %2050 = vmatpush.msra.mxu0 %v2049
    %v2051 = vand.u32 %v723, 4294901760
    %2052 = vmatmul.f32.gmra.mxu0 %v2051
    %v2053 = vpop.f32.mrf.mxu0
    %v2054 = vadd.f32 %v2030, %v2053
    %2055 = vdwg.mxu0
    %2056 = vmatpush.msra.mxu0 0.0
    %2057 = vmatpush.msra.mxu0 0.0
    %2058 = vmatpush.msra.mxu0 0.0
    %2059 = vmatpush.msra.mxu0 0.0
    %2060 = vmatpush.msra.mxu0 0.0
    %2061 = vmatpush.msra.mxu0 0.0
    %2062 = vmatpush.msra.mxu0 0.0
    %2063 = vmatpush.msra.mxu0 0.0
    %2064 = vmatpush.msra.mxu0 0.0
    %2065 = vmatpush.msra.mxu0 0.0
    %2066 = vmatpush.msra.mxu0 0.0
    %2067 = vmatpush.msra.mxu0 0.0
    %2068 = vmatpush.msra.mxu0 0.0
    %2069 = vmatpush.msra.mxu0 0.0
    %2070 = vmatpush.msra.mxu0 0.0
    %v2071 = vand.u32 %v750, 4294901760
    %2072 = vmatpush.msra.mxu0 %v2071
    %v2073 = vand.u32 %v723, 4294901760
    %2074 = vmatmul.f32.gmra.mxu0 %v2073
    %v2075 = vpop.f32.mrf.mxu0
    %v2076 = vadd.f32 %v2054, %v2075
    %2077 = vdwg.mxu0
    %2078 = vmatpush.msra.mxu0 0.0
    %2079 = vmatpush.msra.mxu0 0.0
    %2080 = vmatpush.msra.mxu0 0.0
    %2081 = vmatpush.msra.mxu0 0.0
    %2082 = vmatpush.msra.mxu0 0.0
    %2083 = vmatpush.msra.mxu0 0.0
    %2084 = vmatpush.msra.mxu0 0.0
    %2085 = vmatpush.msra.mxu0 0.0
    %2086 = vmatpush.msra.mxu0 0.0
    %2087 = vmatpush.msra.mxu0 0.0
    %2088 = vmatpush.msra.mxu0 0.0
    %2089 = vmatpush.msra.mxu0 0.0
    %2090 = vmatpush.msra.mxu0 0.0
    %2091 = vmatpush.msra.mxu0 0.0
    %2092 = vmatpush.msra.mxu0 0.0
    %v2093 = vand.u32 %v753, 4294901760
    %2094 = vmatpush.msra.mxu0 %v2093
    %v2095 = vand.u32 %v723, 4294901760
    %v2096 = vsub.f32 %v723, %v2095
    %v2097 = vand.u32 %v2096, 4294901760
    %v2098 = vsub.f32 %v2096, %v2097
    %v2099 = vand.u32 %v2098, 4294901760
    %2100 = vmatmul.f32.gmra.mxu0 %v2099
    %v2101 = vpop.f32.mrf.mxu0
    %v2102 = vadd.f32 0.0, %v2101
    %2103 = vdwg.mxu0
    %2104 = vmatpush.msra.mxu0 0.0
    %2105 = vmatpush.msra.mxu0 0.0
    %2106 = vmatpush.msra.mxu0 0.0
    %2107 = vmatpush.msra.mxu0 0.0
    %2108 = vmatpush.msra.mxu0 0.0
    %2109 = vmatpush.msra.mxu0 0.0
    %2110 = vmatpush.msra.mxu0 0.0
    %2111 = vmatpush.msra.mxu0 0.0
    %2112 = vmatpush.msra.mxu0 0.0
    %2113 = vmatpush.msra.mxu0 0.0
    %2114 = vmatpush.msra.mxu0 0.0
    %2115 = vmatpush.msra.mxu0 0.0
    %2116 = vmatpush.msra.mxu0 0.0
    %2117 = vmatpush.msra.mxu0 0.0
    %2118 = vmatpush.msra.mxu0 0.0
    %v2119 = vand.u32 %v753, 4294901760
    %v2120 = vsub.f32 %v753, %v2119
    %v2121 = vand.u32 %v2120, 4294901760
    %v2122 = vsub.f32 %v2120, %v2121
    %v2123 = vand.u32 %v2122, 4294901760
    %2124 = vmatpush.msra.mxu0 %v2123
    %v2125 = vand.u32 %v723, 4294901760
    %2126 = vmatmul.f32.gmra.mxu0 %v2125
    %v2127 = vpop.f32.mrf.mxu0
    %v2128 = vadd.f32 %v2102, %v2127
    %2129 = vdwg.mxu0
    %2130 = vmatpush.msra.mxu0 0.0
    %2131 = vmatpush.msra.mxu0 0.0
    %2132 = vmatpush.msra.mxu0 0.0
    %2133 = vmatpush.msra.mxu0 0.0
    %2134 = vmatpush.msra.mxu0 0.0
    %2135 = vmatpush.msra.mxu0 0.0
    %2136 = vmatpush.msra.mxu0 0.0
    %2137 = vmatpush.msra.mxu0 0.0
    %2138 = vmatpush.msra.mxu0 0.0
    %2139 = vmatpush.msra.mxu0 0.0
    %2140 = vmatpush.msra.mxu0 0.0
    %2141 = vmatpush.msra.mxu0 0.0
    %2142 = vmatpush.msra.mxu0 0.0
    %2143 = vmatpush.msra.mxu0 0.0
    %2144 = vmatpush.msra.mxu0 0.0
    %v2145 = vand.u32 %v753, 4294901760
    %v2146 = vsub.f32 %v753, %v2145
    %2147 = vmatpush.msra.mxu0 %v2146
    %v2148 = vand.u32 %v723, 4294901760
    %v2149 = vsub.f32 %v723, %v2148
    %2150 = vmatmul.f32.gmra.mxu0 %v2149
    %v2151 = vpop.f32.mrf.mxu0
    %v2152 = vadd.f32 %v2128, %v2151
    %2153 = vdwg.mxu0
    %2154 = vmatpush.msra.mxu0 0.0
    %2155 = vmatpush.msra.mxu0 0.0
    %2156 = vmatpush.msra.mxu0 0.0
    %2157 = vmatpush.msra.mxu0 0.0
    %2158 = vmatpush.msra.mxu0 0.0
    %2159 = vmatpush.msra.mxu0 0.0
    %2160 = vmatpush.msra.mxu0 0.0
    %2161 = vmatpush.msra.mxu0 0.0
    %2162 = vmatpush.msra.mxu0 0.0
    %2163 = vmatpush.msra.mxu0 0.0
    %2164 = vmatpush.msra.mxu0 0.0
    %2165 = vmatpush.msra.mxu0 0.0
    %2166 = vmatpush.msra.mxu0 0.0
    %2167 = vmatpush.msra.mxu0 0.0
    %2168 = vmatpush.msra.mxu0 0.0
    %v2169 = vand.u32 %v753, 4294901760
    %2170 = vmatpush.msra.mxu0 %v2169
    %v2171 = vand.u32 %v723, 4294901760
    %v2172 = vsub.f32 %v723, %v2171
    %v2173 = vand.u32 %v2172, 4294901760
    %2174 = vmatmul.f32.gmra.mxu0 %v2173
    %v2175 = vpop.f32.mrf.mxu0
    %v2176 = vadd.f32 %v2152, %v2175
    %2177 = vdwg.mxu0
    %2178 = vmatpush.msra.mxu0 0.0
    %2179 = vmatpush.msra.mxu0 0.0
    %2180 = vmatpush.msra.mxu0 0.0
    %2181 = vmatpush.msra.mxu0 0.0
    %2182 = vmatpush.msra.mxu0 0.0
    %2183 = vmatpush.msra.mxu0 0.0
    %2184 = vmatpush.msra.mxu0 0.0
    %2185 = vmatpush.msra.mxu0 0.0
    %2186 = vmatpush.msra.mxu0 0.0
    %2187 = vmatpush.msra.mxu0 0.0
    %2188 = vmatpush.msra.mxu0 0.0
    %2189 = vmatpush.msra.mxu0 0.0
    %2190 = vmatpush.msra.mxu0 0.0
    %2191 = vmatpush.msra.mxu0 0.0
    %2192 = vmatpush.msra.mxu0 0.0
    %v2193 = vand.u32 %v753, 4294901760
    %v2194 = vsub.f32 %v753, %v2193
    %v2195 = vand.u32 %v2194, 4294901760
    %2196 = vmatpush.msra.mxu0 %v2195
    %v2197 = vand.u32 %v723, 4294901760
    %2198 = vmatmul.f32.gmra.mxu0 %v2197
    %v2199 = vpop.f32.mrf.mxu0
    %v2200 = vadd.f32 %v2176, %v2199
    %2201 = vdwg.mxu0
    %2202 = vmatpush.msra.mxu0 0.0
    %2203 = vmatpush.msra.mxu0 0.0
    %2204 = vmatpush.msra.mxu0 0.0
    %2205 = vmatpush.msra.mxu0 0.0
    %2206 = vmatpush.msra.mxu0 0.0
    %2207 = vmatpush.msra.mxu0 0.0
    %2208 = vmatpush.msra.mxu0 0.0
    %2209 = vmatpush.msra.mxu0 0.0
    %2210 = vmatpush.msra.mxu0 0.0
    %2211 = vmatpush.msra.mxu0 0.0
    %2212 = vmatpush.msra.mxu0 0.0
    %2213 = vmatpush.msra.mxu0 0.0
    %2214 = vmatpush.msra.mxu0 0.0
    %2215 = vmatpush.msra.mxu0 0.0
    %2216 = vmatpush.msra.mxu0 0.0
    %v2217 = vand.u32 %v753, 4294901760
    %2218 = vmatpush.msra.mxu0 %v2217
    %v2219 = vand.u32 %v723, 4294901760
    %2220 = vmatmul.f32.gmra.mxu0 %v2219
    %v2221 = vpop.f32.mrf.mxu0
    %v2222 = vadd.f32 %v2200, %v2221
    %2223 = vdwg.mxu0
    %2224 = vmatpush.msra.mxu0 0.0
    %2225 = vmatpush.msra.mxu0 0.0
    %2226 = vmatpush.msra.mxu0 0.0
    %2227 = vmatpush.msra.mxu0 0.0
    %2228 = vmatpush.msra.mxu0 0.0
    %2229 = vmatpush.msra.mxu0 0.0
    %2230 = vmatpush.msra.mxu0 0.0
    %2231 = vmatpush.msra.mxu0 0.0
    %2232 = vmatpush.msra.mxu0 0.0
    %2233 = vmatpush.msra.mxu0 0.0
    %2234 = vmatpush.msra.mxu0 0.0
    %2235 = vmatpush.msra.mxu0 0.0
    %2236 = vmatpush.msra.mxu0 0.0
    %2237 = vmatpush.msra.mxu0 0.0
    %2238 = vmatpush.msra.mxu0 0.0
    %v2239 = vand.u32 %v756, 4294901760
    %2240 = vmatpush.msra.mxu0 %v2239
    %v2241 = vand.u32 %v723, 4294901760
    %v2242 = vsub.f32 %v723, %v2241
    %v2243 = vand.u32 %v2242, 4294901760
    %v2244 = vsub.f32 %v2242, %v2243
    %v2245 = vand.u32 %v2244, 4294901760
    %2246 = vmatmul.f32.gmra.mxu0 %v2245
    %v2247 = vpop.f32.mrf.mxu0
    %v2248 = vadd.f32 0.0, %v2247
    %2249 = vdwg.mxu0
    %2250 = vmatpush.msra.mxu0 0.0
    %2251 = vmatpush.msra.mxu0 0.0
    %2252 = vmatpush.msra.mxu0 0.0
    %2253 = vmatpush.msra.mxu0 0.0
    %2254 = vmatpush.msra.mxu0 0.0
    %2255 = vmatpush.msra.mxu0 0.0
    %2256 = vmatpush.msra.mxu0 0.0
    %2257 = vmatpush.msra.mxu0 0.0
    %2258 = vmatpush.msra.mxu0 0.0
    %2259 = vmatpush.msra.mxu0 0.0
    %2260 = vmatpush.msra.mxu0 0.0
    %2261 = vmatpush.msra.mxu0 0.0
    %2262 = vmatpush.msra.mxu0 0.0
    %2263 = vmatpush.msra.mxu0 0.0
    %2264 = vmatpush.msra.mxu0 0.0
    %v2265 = vand.u32 %v756, 4294901760
    %v2266 = vsub.f32 %v756, %v2265
    %v2267 = vand.u32 %v2266, 4294901760
    %v2268 = vsub.f32 %v2266, %v2267
    %v2269 = vand.u32 %v2268, 4294901760
    %2270 = vmatpush.msra.mxu0 %v2269
    %v2271 = vand.u32 %v723, 4294901760
    %2272 = vmatmul.f32.gmra.mxu0 %v2271
    %v2273 = vpop.f32.mrf.mxu0
    %v2274 = vadd.f32 %v2248, %v2273
    %2275 = vdwg.mxu0
    %2276 = vmatpush.msra.mxu0 0.0
    %2277 = vmatpush.msra.mxu0 0.0
    %2278 = vmatpush.msra.mxu0 0.0
    %2279 = vmatpush.msra.mxu0 0.0
    %2280 = vmatpush.msra.mxu0 0.0
    %2281 = vmatpush.msra.mxu0 0.0
    %2282 = vmatpush.msra.mxu0 0.0
    %2283 = vmatpush.msra.mxu0 0.0
    %2284 = vmatpush.msra.mxu0 0.0
    %2285 = vmatpush.msra.mxu0 0.0
    %2286 = vmatpush.msra.mxu0 0.0
    %2287 = vmatpush.msra.mxu0 0.0
    %2288 = vmatpush.msra.mxu0 0.0
    %2289 = vmatpush.msra.mxu0 0.0
    %2290 = vmatpush.msra.mxu0 0.0
    %v2291 = vand.u32 %v756, 4294901760
    %v2292 = vsub.f32 %v756, %v2291
    %2293 = vmatpush.msra.mxu0 %v2292
    %v2294 = vand.u32 %v723, 4294901760
    %v2295 = vsub.f32 %v723, %v2294
    %2296 = vmatmul.f32.gmra.mxu0 %v2295
    %v2297 = vpop.f32.mrf.mxu0
    %v2298 = vadd.f32 %v2274, %v2297
    %2299 = vdwg.mxu0
    %2300 = vmatpush.msra.mxu0 0.0
    %2301 = vmatpush.msra.mxu0 0.0
    %2302 = vmatpush.msra.mxu0 0.0
    %2303 = vmatpush.msra.mxu0 0.0
    %2304 = vmatpush.msra.mxu0 0.0
    %2305 = vmatpush.msra.mxu0 0.0
    %2306 = vmatpush.msra.mxu0 0.0
    %2307 = vmatpush.msra.mxu0 0.0
    %2308 = vmatpush.msra.mxu0 0.0
    %2309 = vmatpush.msra.mxu0 0.0
    %2310 = vmatpush.msra.mxu0 0.0
    %2311 = vmatpush.msra.mxu0 0.0
    %2312 = vmatpush.msra.mxu0 0.0
    %2313 = vmatpush.msra.mxu0 0.0
    %2314 = vmatpush.msra.mxu0 0.0
    %v2315 = vand.u32 %v756, 4294901760
    %2316 = vmatpush.msra.mxu0 %v2315
    %v2317 = vand.u32 %v723, 4294901760
    %v2318 = vsub.f32 %v723, %v2317
    %v2319 = vand.u32 %v2318, 4294901760
    %2320 = vmatmul.f32.gmra.mxu0 %v2319
    %v2321 = vpop.f32.mrf.mxu0
    %v2322 = vadd.f32 %v2298, %v2321
    %2323 = vdwg.mxu0
    %2324 = vmatpush.msra.mxu0 0.0
    %2325 = vmatpush.msra.mxu0 0.0
    %2326 = vmatpush.msra.mxu0 0.0
    %2327 = vmatpush.msra.mxu0 0.0
    %2328 = vmatpush.msra.mxu0 0.0
    %2329 = vmatpush.msra.mxu0 0.0
    %2330 = vmatpush.msra.mxu0 0.0
    %2331 = vmatpush.msra.mxu0 0.0
    %2332 = vmatpush.msra.mxu0 0.0
    %2333 = vmatpush.msra.mxu0 0.0
    %2334 = vmatpush.msra.mxu0 0.0
    %2335 = vmatpush.msra.mxu0 0.0
    %2336 = vmatpush.msra.mxu0 0.0
    %2337 = vmatpush.msra.mxu0 0.0
    %2338 = vmatpush.msra.mxu0 0.0
    %v2339 = vand.u32 %v756, 4294901760
    %v2340 = vsub.f32 %v756, %v2339
    %v2341 = vand.u32 %v2340, 4294901760
    %2342 = vmatpush.msra.mxu0 %v2341
    %v2343 = vand.u32 %v723, 4294901760
    %2344 = vmatmul.f32.gmra.mxu0 %v2343
    %v2345 = vpop.f32.mrf.mxu0
    %v2346 = vadd.f32 %v2322, %v2345
    %2347 = vdwg.mxu0
    %2348 = vmatpush.msra.mxu0 0.0
    %2349 = vmatpush.msra.mxu0 0.0
    %2350 = vmatpush.msra.mxu0 0.0
    %2351 = vmatpush.msra.mxu0 0.0
    %2352 = vmatpush.msra.mxu0 0.0
    %2353 = vmatpush.msra.mxu0 0.0
    %2354 = vmatpush.msra.mxu0 0.0
    %2355 = vmatpush.msra.mxu0 0.0
    %2356 = vmatpush.msra.mxu0 0.0
    %2357 = vmatpush.msra.mxu0 0.0
    %2358 = vmatpush.msra.mxu0 0.0
    %2359 = vmatpush.msra.mxu0 0.0
    %2360 = vmatpush.msra.mxu0 0.0
    %2361 = vmatpush.msra.mxu0 0.0
    %2362 = vmatpush.msra.mxu0 0.0
    %v2363 = vand.u32 %v756, 4294901760
    %2364 = vmatpush.msra.mxu0 %v2363
    %v2365 = vand.u32 %v723, 4294901760
    %2366 = vmatmul.f32.gmra.mxu0 %v2365
    %v2367 = vpop.f32.mrf.mxu0
    %v2368 = vadd.f32 %v2346, %v2367
    %2369 = vdwg.mxu0
    %2370 = vmatpush.msra.mxu0 0.0
    %2371 = vmatpush.msra.mxu0 0.0
    %2372 = vmatpush.msra.mxu0 0.0
    %2373 = vmatpush.msra.mxu0 0.0
    %2374 = vmatpush.msra.mxu0 0.0
    %2375 = vmatpush.msra.mxu0 0.0
    %2376 = vmatpush.msra.mxu0 0.0
    %2377 = vmatpush.msra.mxu0 0.0
    %2378 = vmatpush.msra.mxu0 0.0
    %2379 = vmatpush.msra.mxu0 0.0
    %2380 = vmatpush.msra.mxu0 0.0
    %2381 = vmatpush.msra.mxu0 0.0
    %2382 = vmatpush.msra.mxu0 0.0
    %2383 = vmatpush.msra.mxu0 0.0
    %2384 = vmatpush.msra.mxu0 0.0
    %v2385 = vand.u32 %v759, 4294901760
    %2386 = vmatpush.msra.mxu0 %v2385
    %v2387 = vand.u32 %v723, 4294901760
    %v2388 = vsub.f32 %v723, %v2387
    %v2389 = vand.u32 %v2388, 4294901760
    %v2390 = vsub.f32 %v2388, %v2389
    %v2391 = vand.u32 %v2390, 4294901760
    %2392 = vmatmul.f32.gmra.mxu0 %v2391
    %v2393 = vpop.f32.mrf.mxu0
    %v2394 = vadd.f32 0.0, %v2393
    %2395 = vdwg.mxu0
    %2396 = vmatpush.msra.mxu0 0.0
    %2397 = vmatpush.msra.mxu0 0.0
    %2398 = vmatpush.msra.mxu0 0.0
    %2399 = vmatpush.msra.mxu0 0.0
    %2400 = vmatpush.msra.mxu0 0.0
    %2401 = vmatpush.msra.mxu0 0.0
    %2402 = vmatpush.msra.mxu0 0.0
    %2403 = vmatpush.msra.mxu0 0.0
    %2404 = vmatpush.msra.mxu0 0.0
    %2405 = vmatpush.msra.mxu0 0.0
    %2406 = vmatpush.msra.mxu0 0.0
    %2407 = vmatpush.msra.mxu0 0.0
    %2408 = vmatpush.msra.mxu0 0.0
    %2409 = vmatpush.msra.mxu0 0.0
    %2410 = vmatpush.msra.mxu0 0.0
    %v2411 = vand.u32 %v759, 4294901760
    %v2412 = vsub.f32 %v759, %v2411
    %v2413 = vand.u32 %v2412, 4294901760
    %v2414 = vsub.f32 %v2412, %v2413
    %v2415 = vand.u32 %v2414, 4294901760
    %2416 = vmatpush.msra.mxu0 %v2415
    %v2417 = vand.u32 %v723, 4294901760
    %2418 = vmatmul.f32.gmra.mxu0 %v2417
    %v2419 = vpop.f32.mrf.mxu0
    %v2420 = vadd.f32 %v2394, %v2419
    %2421 = vdwg.mxu0
    %2422 = vmatpush.msra.mxu0 0.0
    %2423 = vmatpush.msra.mxu0 0.0
    %2424 = vmatpush.msra.mxu0 0.0
    %2425 = vmatpush.msra.mxu0 0.0
    %2426 = vmatpush.msra.mxu0 0.0
    %2427 = vmatpush.msra.mxu0 0.0
    %2428 = vmatpush.msra.mxu0 0.0
    %2429 = vmatpush.msra.mxu0 0.0
    %2430 = vmatpush.msra.mxu0 0.0
    %2431 = vmatpush.msra.mxu0 0.0
    %2432 = vmatpush.msra.mxu0 0.0
    %2433 = vmatpush.msra.mxu0 0.0
    %2434 = vmatpush.msra.mxu0 0.0
    %2435 = vmatpush.msra.mxu0 0.0
    %2436 = vmatpush.msra.mxu0 0.0
    %v2437 = vand.u32 %v759, 4294901760
    %v2438 = vsub.f32 %v759, %v2437
    %2439 = vmatpush.msra.mxu0 %v2438
    %v2440 = vand.u32 %v723, 4294901760
    %v2441 = vsub.f32 %v723, %v2440
    %2442 = vmatmul.f32.gmra.mxu0 %v2441
    %v2443 = vpop.f32.mrf.mxu0
    %v2444 = vadd.f32 %v2420, %v2443
    %2445 = vdwg.mxu0
    %2446 = vmatpush.msra.mxu0 0.0
    %2447 = vmatpush.msra.mxu0 0.0
    %2448 = vmatpush.msra.mxu0 0.0
    %2449 = vmatpush.msra.mxu0 0.0
    %2450 = vmatpush.msra.mxu0 0.0
    %2451 = vmatpush.msra.mxu0 0.0
    %2452 = vmatpush.msra.mxu0 0.0
    %2453 = vmatpush.msra.mxu0 0.0
    %2454 = vmatpush.msra.mxu0 0.0
    %2455 = vmatpush.msra.mxu0 0.0
    %2456 = vmatpush.msra.mxu0 0.0
    %2457 = vmatpush.msra.mxu0 0.0
    %2458 = vmatpush.msra.mxu0 0.0
    %2459 = vmatpush.msra.mxu0 0.0
    %2460 = vmatpush.msra.mxu0 0.0
    %v2461 = vand.u32 %v759, 4294901760
    %2462 = vmatpush.msra.mxu0 %v2461
    %v2463 = vand.u32 %v723, 4294901760
    %v2464 = vsub.f32 %v723, %v2463
    %v2465 = vand.u32 %v2464, 4294901760
    %2466 = vmatmul.f32.gmra.mxu0 %v2465
    %v2467 = vpop.f32.mrf.mxu0
    %v2468 = vadd.f32 %v2444, %v2467
    %2469 = vdwg.mxu0
    %2470 = vmatpush.msra.mxu0 0.0
    %2471 = vmatpush.msra.mxu0 0.0
    %2472 = vmatpush.msra.mxu0 0.0
    %2473 = vmatpush.msra.mxu0 0.0
    %2474 = vmatpush.msra.mxu0 0.0
    %2475 = vmatpush.msra.mxu0 0.0
    %2476 = vmatpush.msra.mxu0 0.0
    %2477 = vmatpush.msra.mxu0 0.0
    %2478 = vmatpush.msra.mxu0 0.0
    %2479 = vmatpush.msra.mxu0 0.0
    %2480 = vmatpush.msra.mxu0 0.0
    %2481 = vmatpush.msra.mxu0 0.0
    %2482 = vmatpush.msra.mxu0 0.0
    %2483 = vmatpush.msra.mxu0 0.0
    %2484 = vmatpush.msra.mxu0 0.0
    %v2485 = vand.u32 %v759, 4294901760
    %v2486 = vsub.f32 %v759, %v2485
    %v2487 = vand.u32 %v2486, 4294901760
    %2488 = vmatpush.msra.mxu0 %v2487
    %v2489 = vand.u32 %v723, 4294901760
    %2490 = vmatmul.f32.gmra.mxu0 %v2489
    %v2491 = vpop.f32.mrf.mxu0
    %v2492 = vadd.f32 %v2468, %v2491
    %2493 = vdwg.mxu0
    %2494 = vmatpush.msra.mxu0 0.0
    %2495 = vmatpush.msra.mxu0 0.0
    %2496 = vmatpush.msra.mxu0 0.0
    %2497 = vmatpush.msra.mxu0 0.0
    %2498 = vmatpush.msra.mxu0 0.0
    %2499 = vmatpush.msra.mxu0 0.0
    %2500 = vmatpush.msra.mxu0 0.0
    %2501 = vmatpush.msra.mxu0 0.0
    %2502 = vmatpush.msra.mxu0 0.0
    %2503 = vmatpush.msra.mxu0 0.0
    %2504 = vmatpush.msra.mxu0 0.0
    %2505 = vmatpush.msra.mxu0 0.0
    %2506 = vmatpush.msra.mxu0 0.0
    %2507 = vmatpush.msra.mxu0 0.0
    %2508 = vmatpush.msra.mxu0 0.0
    %v2509 = vand.u32 %v759, 4294901760
    %2510 = vmatpush.msra.mxu0 %v2509
    %v2511 = vand.u32 %v723, 4294901760
    %2512 = vmatmul.f32.gmra.mxu0 %v2511
    %v2513 = vpop.f32.mrf.mxu0
    %v2514 = vadd.f32 %v2492, %v2513
    %2515 = vdwg.mxu0
    %2516 = vmatpush.msra.mxu0 0.0
    %2517 = vmatpush.msra.mxu0 0.0
    %2518 = vmatpush.msra.mxu0 0.0
    %2519 = vmatpush.msra.mxu0 0.0
    %2520 = vmatpush.msra.mxu0 0.0
    %2521 = vmatpush.msra.mxu0 0.0
    %2522 = vmatpush.msra.mxu0 0.0
    %2523 = vmatpush.msra.mxu0 0.0
    %2524 = vmatpush.msra.mxu0 0.0
    %2525 = vmatpush.msra.mxu0 0.0
    %2526 = vmatpush.msra.mxu0 0.0
    %2527 = vmatpush.msra.mxu0 0.0
    %2528 = vmatpush.msra.mxu0 0.0
    %2529 = vmatpush.msra.mxu0 0.0
    %2530 = vmatpush.msra.mxu0 0.0
    %v2531 = vand.u32 %v762, 4294901760
    %2532 = vmatpush.msra.mxu0 %v2531
    %v2533 = vand.u32 %v723, 4294901760
    %v2534 = vsub.f32 %v723, %v2533
    %v2535 = vand.u32 %v2534, 4294901760
    %v2536 = vsub.f32 %v2534, %v2535
    %v2537 = vand.u32 %v2536, 4294901760
    %2538 = vmatmul.f32.gmra.mxu0 %v2537
    %v2539 = vpop.f32.mrf.mxu0
    %v2540 = vadd.f32 0.0, %v2539
    %2541 = vdwg.mxu0
    %2542 = vmatpush.msra.mxu0 0.0
    %2543 = vmatpush.msra.mxu0 0.0
    %2544 = vmatpush.msra.mxu0 0.0
    %2545 = vmatpush.msra.mxu0 0.0
    %2546 = vmatpush.msra.mxu0 0.0
    %2547 = vmatpush.msra.mxu0 0.0
    %2548 = vmatpush.msra.mxu0 0.0
    %2549 = vmatpush.msra.mxu0 0.0
    %2550 = vmatpush.msra.mxu0 0.0
    %2551 = vmatpush.msra.mxu0 0.0
    %2552 = vmatpush.msra.mxu0 0.0
    %2553 = vmatpush.msra.mxu0 0.0
    %2554 = vmatpush.msra.mxu0 0.0
    %2555 = vmatpush.msra.mxu0 0.0
    %2556 = vmatpush.msra.mxu0 0.0
    %v2557 = vand.u32 %v762, 4294901760
    %v2558 = vsub.f32 %v762, %v2557
    %v2559 = vand.u32 %v2558, 4294901760
    %v2560 = vsub.f32 %v2558, %v2559
    %v2561 = vand.u32 %v2560, 4294901760
    %2562 = vmatpush.msra.mxu0 %v2561
    %v2563 = vand.u32 %v723, 4294901760
    %2564 = vmatmul.f32.gmra.mxu0 %v2563
    %v2565 = vpop.f32.mrf.mxu0
    %v2566 = vadd.f32 %v2540, %v2565
    %2567 = vdwg.mxu0
    %2568 = vmatpush.msra.mxu0 0.0
    %2569 = vmatpush.msra.mxu0 0.0
    %2570 = vmatpush.msra.mxu0 0.0
    %2571 = vmatpush.msra.mxu0 0.0
    %2572 = vmatpush.msra.mxu0 0.0
    %2573 = vmatpush.msra.mxu0 0.0
    %2574 = vmatpush.msra.mxu0 0.0
    %2575 = vmatpush.msra.mxu0 0.0
    %2576 = vmatpush.msra.mxu0 0.0
    %2577 = vmatpush.msra.mxu0 0.0
    %2578 = vmatpush.msra.mxu0 0.0
    %2579 = vmatpush.msra.mxu0 0.0
    %2580 = vmatpush.msra.mxu0 0.0
    %2581 = vmatpush.msra.mxu0 0.0
    %2582 = vmatpush.msra.mxu0 0.0
    %v2583 = vand.u32 %v762, 4294901760
    %v2584 = vsub.f32 %v762, %v2583
    %2585 = vmatpush.msra.mxu0 %v2584
    %v2586 = vand.u32 %v723, 4294901760
    %v2587 = vsub.f32 %v723, %v2586
    %2588 = vmatmul.f32.gmra.mxu0 %v2587
    %v2589 = vpop.f32.mrf.mxu0
    %v2590 = vadd.f32 %v2566, %v2589
    %2591 = vdwg.mxu0
    %2592 = vmatpush.msra.mxu0 0.0
    %2593 = vmatpush.msra.mxu0 0.0
    %2594 = vmatpush.msra.mxu0 0.0
    %2595 = vmatpush.msra.mxu0 0.0
    %2596 = vmatpush.msra.mxu0 0.0
    %2597 = vmatpush.msra.mxu0 0.0
    %2598 = vmatpush.msra.mxu0 0.0
    %2599 = vmatpush.msra.mxu0 0.0
    %2600 = vmatpush.msra.mxu0 0.0
    %2601 = vmatpush.msra.mxu0 0.0
    %2602 = vmatpush.msra.mxu0 0.0
    %2603 = vmatpush.msra.mxu0 0.0
    %2604 = vmatpush.msra.mxu0 0.0
    %2605 = vmatpush.msra.mxu0 0.0
    %2606 = vmatpush.msra.mxu0 0.0
    %v2607 = vand.u32 %v762, 4294901760
    %2608 = vmatpush.msra.mxu0 %v2607
    %v2609 = vand.u32 %v723, 4294901760
    %v2610 = vsub.f32 %v723, %v2609
    %v2611 = vand.u32 %v2610, 4294901760
    %2612 = vmatmul.f32.gmra.mxu0 %v2611
    %v2613 = vpop.f32.mrf.mxu0
    %v2614 = vadd.f32 %v2590, %v2613
    %2615 = vdwg.mxu0
    %2616 = vmatpush.msra.mxu0 0.0
    %2617 = vmatpush.msra.mxu0 0.0
    %2618 = vmatpush.msra.mxu0 0.0
    %2619 = vmatpush.msra.mxu0 0.0
    %2620 = vmatpush.msra.mxu0 0.0
    %2621 = vmatpush.msra.mxu0 0.0
    %2622 = vmatpush.msra.mxu0 0.0
    %2623 = vmatpush.msra.mxu0 0.0
    %2624 = vmatpush.msra.mxu0 0.0
    %2625 = vmatpush.msra.mxu0 0.0
    %2626 = vmatpush.msra.mxu0 0.0
    %2627 = vmatpush.msra.mxu0 0.0
    %2628 = vmatpush.msra.mxu0 0.0
    %2629 = vmatpush.msra.mxu0 0.0
    %2630 = vmatpush.msra.mxu0 0.0
    %v2631 = vand.u32 %v762, 4294901760
    %v2632 = vsub.f32 %v762, %v2631
    %v2633 = vand.u32 %v2632, 4294901760
    %2634 = vmatpush.msra.mxu0 %v2633
    %v2635 = vand.u32 %v723, 4294901760
    %2636 = vmatmul.f32.gmra.mxu0 %v2635
    %v2637 = vpop.f32.mrf.mxu0
    %v2638 = vadd.f32 %v2614, %v2637
    %2639 = vdwg.mxu0
    %2640 = vmatpush.msra.mxu0 0.0
    %2641 = vmatpush.msra.mxu0 0.0
    %2642 = vmatpush.msra.mxu0 0.0
    %2643 = vmatpush.msra.mxu0 0.0
    %2644 = vmatpush.msra.mxu0 0.0
    %2645 = vmatpush.msra.mxu0 0.0
    %2646 = vmatpush.msra.mxu0 0.0
    %2647 = vmatpush.msra.mxu0 0.0
    %2648 = vmatpush.msra.mxu0 0.0
    %2649 = vmatpush.msra.mxu0 0.0
    %2650 = vmatpush.msra.mxu0 0.0
    %2651 = vmatpush.msra.mxu0 0.0
    %2652 = vmatpush.msra.mxu0 0.0
    %2653 = vmatpush.msra.mxu0 0.0
    %2654 = vmatpush.msra.mxu0 0.0
    %v2655 = vand.u32 %v762, 4294901760
    %2656 = vmatpush.msra.mxu0 %v2655
    %v2657 = vand.u32 %v723, 4294901760
    %2658 = vmatmul.f32.gmra.mxu0 %v2657
    %v2659 = vpop.f32.mrf.mxu0
    %v2660 = vadd.f32 %v2638, %v2659
    %2661 = vdwg.mxu0
    %2662 = vst [vmem:[#allocation8] sm:$0xff] %v908
    %2663 = vst [vmem:[#allocation8 + $0x8] sm:$0xff] %v1054
    %2664 = vst [vmem:[#allocation8 + $0x10] sm:$0xff] %v1200
    %2665 = vst [vmem:[#allocation8 + $0x18] sm:$0xff] %v1346
    %2666 = vst [vmem:[#allocation8 + $0x20] sm:$0xff] %v1492
    %2667 = vst [vmem:[#allocation8 + $0x28] sm:$0xff] %v1638
    %2668 = vst [vmem:[#allocation8 + $0x30] sm:$0xff] %v1784
    %2669 = vst [vmem:[#allocation8 + $0x38] sm:$0xff] %v1930
    %2670 = vst [vmem:[#allocation8 + $0x40] sm:$0xff] %v2076
    %2671 = vst [vmem:[#allocation8 + $0x48] sm:$0xff] %v2222
    %2672 = vst [vmem:[#allocation8 + $0x50] sm:$0xff] %v2368
    %2673 = vst [vmem:[#allocation8 + $0x58] sm:$0xff] %v2514
    %2674 = vst [vmem:[#allocation8 + $0x60] sm:$0xff] %v2660
    // Predicated region
    $region26: #{tpu_custom_call.1} parent=1 // pred_check
      _
    $region27: #{tpu_custom_call.1} parent=1 // pred_check_branch
      %2676 = sbr.rel (0) target = $region29
    $region28: #{tpu_custom_call.1} parent=1 // pred_region
      %2678 = vsyncadd [#allocation4], 0
      %s2680 = sshll.u32 [#allocation8], 4
      %s2681 = int_to_ptr.vmem [resolvable:$true] %s2680
      %s2682 = sshll.u32 %s3, 4
      %s2683 = int_to_ptr.hbm [resolvable:$true] %s2682
      %2685 = dma.vmem_to_hbm [thread:$0]  %s2681, 1664, %s2683, [#allocation4]
    $region29: #{tpu_custom_call.1} parent=1 // pred_fallthru
      _
    // Predicated region
    $region30: #{tpu_custom_call.1} parent=1 // pred_check
      _
    $region31: #{tpu_custom_call.1} parent=1 // pred_check_branch
      %2687 = sbr.rel (0) target = $region33
    $region32: #{tpu_custom_call.1} parent=1 // pred_region
      %2689 = dma.done [#allocation4], 1664
    $region33: #{tpu_custom_call.1} parent=1 // pred_fallthru
      _
    %2690 = vsyncpa [#allocation3], 1
    %2691 = vsyncpa [#allocation6], 1
    %2692 = vsyncpa [#allocation4], 1

</llo_original>
